<compile_context>
chip_gen: v6e
topology: v6e:2x2x1
jax: 0.10.0
libtpu: 0.0.40
codegen_flags: <defaults>
</compile_context>

<pallas_src>
import jax
import jax.numpy as jnp
from jax.experimental import pallas as pl
from jax.experimental.pallas import tpu as pltpu

IN_DIM = 28 * 28   # 784 (multiple of 8; no explicit lane padding needed)
H1 = 512
H2 = 128
OUT_DIM = 10
OUT_PAD = 128      # lane-dense output tile; columns 10..127 are exact zeros
MAX_TILE_B = 512   # cap keeps VMEM comfortably inside v5e's 16 MiB scoped default


def _round_up(n, m):
    return ((n + m - 1) // m) * m


def dnn_kernel(x_ref, w1_ref, b1_ref, w2_ref, b2_ref, w3_ref, b3_ref, o_ref):
    # Layer 1: Linear(784 -> 512) + ReLU   (bf16 operands, f32 accumulate)
    h1 = jnp.dot(x_ref[...], w1_ref[...], preferred_element_type=jnp.float32)
    h1 = jnp.maximum(h1 + b1_ref[...], 0.0).astype(jnp.bfloat16)
    # Layer 2: Linear(512 -> 128) + ReLU
    h2 = jnp.dot(h1, w2_ref[...], preferred_element_type=jnp.float32)
    h2 = jnp.maximum(h2 + b2_ref[...], 0.0).astype(jnp.bfloat16)
    # Layer 3: Linear(128 -> 128); columns 10..127 are exact-zero padding.
    out = jnp.dot(h2, w3_ref[...], preferred_element_type=jnp.float32) + b3_ref[...]
    o_ref[...] = out.astype(o_ref.dtype)


def prepare_params(params):
    """One-time weight prep (hoisted out of the per-call forward):
    cast weights to bf16 and pad the layer-3 output dim 10 -> 128 lanes."""
    w1, b1, w2, b2, w3, b3 = params
    w1_b = w1.astype(jnp.bfloat16)                                   # (784, 512)
    w2_b = w2.astype(jnp.bfloat16)                                   # (512, 128)
    w3_p = jnp.zeros((H2, OUT_PAD), jnp.bfloat16).at[:, :OUT_DIM].set(
        w3.astype(jnp.bfloat16))                                     # (128, 128)
    b3_p = jnp.zeros((1, OUT_PAD), jnp.float32).at[:, :OUT_DIM].set(b3)
    return (w1_b, b1, w2_b, b2, w3_p, b3_p)


@jax.jit
def dnn_forward(x, prepared):
    """x: (B, 1, 28, 28) float32 NCHW.  prepared: output of prepare_params().
    Returns (B, 10) float32 logits."""
    w1_b, b1, w2_b, b2, w3_p, b3_p = prepared
    B = x.shape[0]
    x_flat = x.reshape(B, -1).astype(jnp.bfloat16)          # nn.Flatten() + bf16 for MXU

    # Adaptive batch tile:
    #  * large B: up to MAX_TILE_B rows per grid step (amortizes ~0.35us/step overhead).
    #  * small B: pad only to a 16-row (bf16 sublane) multiple, sized so the batch
    #    splits into >=2 steps whenever possible ("parallel" axis -> both v7x TCs).
    tile_b = min(MAX_TILE_B, max(16, _round_up(pl.cdiv(B, 2), 16)))
    b_pad = _round_up(B, tile_b)
    if b_pad != B:
        x_flat = jnp.pad(x_flat, ((0, b_pad - B), (0, 0)))

    grid = (b_pad // tile_b,)
    resident = lambda shape: pl.BlockSpec(shape, lambda i: (0, 0))  # fetched once, stays in VMEM

    flops = 2 * b_pad * (IN_DIM * H1 + H1 * H2 + H2 * OUT_PAD)
    bytes_accessed = (
        x_flat.size * 2 + w1_b.size * 2 + w2_b.size * 2 + w3_p.size * 2
        + b1.size * 4 + b2.size * 4 + b3_p.size * 4
        + b_pad * OUT_PAD * 4
    )

    out = pl.pallas_call(
        dnn_kernel,
        out_shape=jax.ShapeDtypeStruct((b_pad, OUT_PAD), jnp.float32),
        grid=grid,
        in_specs=[
            # Pipelined x tiles; K=784 is legal (equals the full array dim).
            pl.BlockSpec((tile_b, IN_DIM), lambda i: (i, 0)),
            resident((IN_DIM, H1)), resident((1, H1)),
            resident((H1, H2)),     resident((1, H2)),
            resident((H2, OUT_PAD)), resident((1, OUT_PAD)),
        ],
        out_specs=pl.BlockSpec((tile_b, OUT_PAD), lambda i: (i, 0)),
        compiler_params=pltpu.CompilerParams(
            dimension_semantics=("parallel",)),                  # batch axis -> 2 TCs on v7x
        cost_estimate=pl.CostEstimate(
            flops=flops, transcendentals=0, bytes_accessed=bytes_accessed),
    )(x_flat, w1_b, b1, w2_b, b2, w3_p, b3_p)

    return out[:B, :OUT_DIM]


def init_params(key):
    """Deterministic parameter init (weights stored as (in, out)), f32 master copies."""
    ks = jax.random.split(key, 6)
    def lin(kw, kb, fan_in, fan_out):
        bound = 1.0 / jnp.sqrt(fan_in)
        w = jax.random.uniform(kw, (fan_in, fan_out), jnp.float32, -bound, bound)
        b = jax.random.uniform(kb, (1, fan_out), jnp.float32, -bound, bound)
        return w, b
    w1, b1 = lin(ks[0], ks[1], IN_DIM, H1)
    w2, b2 = lin(ks[2], ks[3], H1, H2)
    w3, b3 = lin(ks[4], ks[5], H2, OUT_DIM)
    return (w1, b1, w2, b2, w3, b3)


def dnn_reference(x, params):
    """Pure-JAX f32 reference (matches the PyTorch module exactly)."""
    w1, b1, w2, b2, w3, b3 = params
    h = x.reshape(x.shape[0], -1)
    h = jnp.maximum(h @ w1 + b1, 0.0)
    h = jnp.maximum(h @ w2 + b2, 0.0)
    return h @ w3 + b3


if __name__ == "__main__":
    key = jax.random.PRNGKey(0)
    kx, kp = jax.random.split(key)
    B = 8
    x = jax.random.normal(kx, (B, 1, 28, 28), jnp.float32)
    params = init_params(kp)
    prepared = prepare_params(params)   # one-time bf16 cast + output-dim pad

    out = jax.block_until_ready(dnn_forward(x, prepared))
    ref = jax.block_until_ready(dnn_reference(x, params))

    assert out.shape == (B, OUT_DIM)
    # bf16 weights/activations (f32 accumulation) -> loosened tolerance vs f32 ref.
    assert jnp.allclose(out, ref, atol=5e-2, rtol=5e-2), float(jnp.max(jnp.abs(out - ref)))
    print("KERNEL_OK")
</pallas_src>

<mosaic_0001>
module attributes {stable_mosaic.version = 11 : i64} {
  func.func @dnn_kernel(%arg0: i32, %arg1: memref<16x784xbf16, #tpu.memory_space<vmem>>, %arg2: memref<784x512xbf16, #tpu.memory_space<vmem>>, %arg3: memref<1x512xf32, #tpu.memory_space<vmem>>, %arg4: memref<512x128xbf16, #tpu.memory_space<vmem>>, %arg5: memref<1x128xf32, #tpu.memory_space<vmem>>, %arg6: memref<128x128xbf16, #tpu.memory_space<vmem>>, %arg7: memref<1x128xf32, #tpu.memory_space<vmem>>, %arg8: memref<16x128xf32, #tpu.memory_space<vmem>>) attributes {dimension_semantics = [#tpu.dimension_semantics<parallel>], iteration_bounds = array<i64: 1>, scalar_prefetch = 0 : i64, scratch_operands = 0 : i64, tpu.core_type = #tpu.core_type<tc>, window_params = [{transform_indices = @transform_0, window_bounds = array<i64: 16, 784>}, {pipeline_mode = #tpu.pipeline_mode<synchronous>, transform_indices = @transform_1, window_bounds = array<i64: 784, 512>}, {pipeline_mode = #tpu.pipeline_mode<synchronous>, transform_indices = @transform_2, window_bounds = array<i64: 1, 512>}, {pipeline_mode = #tpu.pipeline_mode<synchronous>, transform_indices = @transform_3, window_bounds = array<i64: 512, 128>}, {pipeline_mode = #tpu.pipeline_mode<synchronous>, transform_indices = @transform_4, window_bounds = array<i64: 1, 128>}, {pipeline_mode = #tpu.pipeline_mode<synchronous>, transform_indices = @transform_5, window_bounds = array<i64: 128, 128>}, {pipeline_mode = #tpu.pipeline_mode<synchronous>, transform_indices = @transform_6, window_bounds = array<i64: 1, 128>}, {transform_indices = @transform_7, window_bounds = array<i64: 16, 128>}]} {
    %c0 = arith.constant 0 : index
    %c0_0 = arith.constant 0 : index
    %0 = vector.load %arg1[%c0, %c0_0] : memref<16x784xbf16, #tpu.memory_space<vmem>>, vector<16x784xbf16>
    %c0_1 = arith.constant 0 : index
    %c0_2 = arith.constant 0 : index
    %1 = vector.load %arg2[%c0_1, %c0_2] : memref<784x512xbf16, #tpu.memory_space<vmem>>, vector<784x512xbf16>
    %cst = arith.constant dense<0.000000e+00> : vector<16x512xf32>
    %2 = tpu.matmul %0, %1, %cst {dimension_numbers = #tpu.dot_dimension_numbers<[1], [0], [0], [1], [0, 0, 1, 1], [], []>} : vector<16x784xbf16>, vector<784x512xbf16>, vector<16x512xf32> -> vector<16x512xf32>
    %c0_3 = arith.constant 0 : index
    %c0_4 = arith.constant 0 : index
    %3 = vector.load %arg3[%c0_3, %c0_4] : memref<1x512xf32, #tpu.memory_space<vmem>>, vector<1x512xf32>
    %4 = vector.broadcast %3 : vector<1x512xf32> to vector<16x512xf32>
    %5 = arith.addf %2, %4 : vector<16x512xf32>
    %cst_5 = arith.constant 0.000000e+00 : f32
    %6 = vector.broadcast %cst_5 : f32 to vector<16x512xf32>
    %7 = arith.maximumf %5, %6 : vector<16x512xf32>
    %8 = arith.truncf %7 : vector<16x512xf32> to vector<16x512xbf16>
    %c0_6 = arith.constant 0 : index
    %c0_7 = arith.constant 0 : index
    %9 = vector.load %arg4[%c0_6, %c0_7] : memref<512x128xbf16, #tpu.memory_space<vmem>>, vector<512x128xbf16>
    %cst_8 = arith.constant dense<0.000000e+00> : vector<16x128xf32>
    %10 = tpu.matmul %8, %9, %cst_8 {dimension_numbers = #tpu.dot_dimension_numbers<[1], [0], [0], [1], [0, 0, 1, 1], [], []>} : vector<16x512xbf16>, vector<512x128xbf16>, vector<16x128xf32> -> vector<16x128xf32>
    %c0_9 = arith.constant 0 : index
    %c0_10 = arith.constant 0 : index
    %11 = vector.load %arg5[%c0_9, %c0_10] : memref<1x128xf32, #tpu.memory_space<vmem>>, vector<1x128xf32>
    %12 = vector.broadcast %11 : vector<1x128xf32> to vector<16x128xf32>
    %13 = arith.addf %10, %12 : vector<16x128xf32>
    %cst_11 = arith.constant 0.000000e+00 : f32
    %14 = vector.broadcast %cst_11 : f32 to vector<16x128xf32>
    %15 = arith.maximumf %13, %14 : vector<16x128xf32>
    %16 = arith.truncf %15 : vector<16x128xf32> to vector<16x128xbf16>
    %c0_12 = arith.constant 0 : index
    %c0_13 = arith.constant 0 : index
    %17 = vector.load %arg6[%c0_12, %c0_13] : memref<128x128xbf16, #tpu.memory_space<vmem>>, vector<128x128xbf16>
    %cst_14 = arith.constant dense<0.000000e+00> : vector<16x128xf32>
    %18 = tpu.matmul %16, %17, %cst_14 {dimension_numbers = #tpu.dot_dimension_numbers<[1], [0], [0], [1], [0, 0, 1, 1], [], []>} : vector<16x128xbf16>, vector<128x128xbf16>, vector<16x128xf32> -> vector<16x128xf32>
    %c0_15 = arith.constant 0 : index
    %c0_16 = arith.constant 0 : index
    %19 = vector.load %arg7[%c0_15, %c0_16] : memref<1x128xf32, #tpu.memory_space<vmem>>, vector<1x128xf32>
    %20 = vector.broadcast %19 : vector<1x128xf32> to vector<16x128xf32>
    %21 = arith.addf %18, %20 : vector<16x128xf32>
    %c0_17 = arith.constant 0 : index
    %c0_18 = arith.constant 0 : index
    %22 = vector.load %arg8[%c0_17, %c0_18] : memref<16x128xf32, #tpu.memory_space<vmem>>, vector<16x128xf32>
    tpu.vector_store %arg8[%c0_17, %c0_18], %21 {strides = array<i32>} : memref<16x128xf32, #tpu.memory_space<vmem>>, vector<16x128xf32>,
    return
  }
  func.func @transform_0(%arg0: i32) -> (i32, i32) {
    %c0_i32 = arith.constant 0 : i32
    %c0_i32_0 = arith.constant 0 : i32
    return %arg0, %c0_i32 : i32, i32
  }
  func.func @transform_1(%arg0: i32) -> (i32, i32) {
    %c0_i32 = arith.constant 0 : i32
    %c0_i32_0 = arith.constant 0 : i32
    %c0_i32_1 = arith.constant 0 : i32
    return %c0_i32, %c0_i32_0 : i32, i32
  }
  func.func @transform_2(%arg0: i32) -> (i32, i32) {
    %c0_i32 = arith.constant 0 : i32
    %c0_i32_0 = arith.constant 0 : i32
    %c0_i32_1 = arith.constant 0 : i32
    return %c0_i32, %c0_i32_0 : i32, i32
  }
  func.func @transform_3(%arg0: i32) -> (i32, i32) {
    %c0_i32 = arith.constant 0 : i32
    %c0_i32_0 = arith.constant 0 : i32
    %c0_i32_1 = arith.constant 0 : i32
    return %c0_i32, %c0_i32_0 : i32, i32
  }
  func.func @transform_4(%arg0: i32) -> (i32, i32) {
    %c0_i32 = arith.constant 0 : i32
    %c0_i32_0 = arith.constant 0 : i32
    %c0_i32_1 = arith.constant 0 : i32
    return %c0_i32, %c0_i32_0 : i32, i32
  }
  func.func @transform_5(%arg0: i32) -> (i32, i32) {
    %c0_i32 = arith.constant 0 : i32
    %c0_i32_0 = arith.constant 0 : i32
    %c0_i32_1 = arith.constant 0 : i32
    return %c0_i32, %c0_i32_0 : i32, i32
  }
  func.func @transform_6(%arg0: i32) -> (i32, i32) {
    %c0_i32 = arith.constant 0 : i32
    %c0_i32_0 = arith.constant 0 : i32
    %c0_i32_1 = arith.constant 0 : i32
    return %c0_i32, %c0_i32_0 : i32, i32
  }
  func.func @transform_7(%arg0: i32) -> (i32, i32) {
    %c0_i32 = arith.constant 0 : i32
    %c0_i32_0 = arith.constant 0 : i32
    return %arg0, %c0_i32 : i32, i32
  }
}

</mosaic_0001>

<llo_original>
// kernel: dnn_forward.1
$region0: #{dnn_forward.1}
  #allocation0 [shape = 'u32[]', space=smem, size = 0x4, offset = 0x4, fixed_abs, tag = 'smem constant byte address 0x4 - core index']
  #allocation1 [shape = 'u32[144,128]{1,0:T(1,128)}', space=vmem, size = 0x12000, scoped, tag = 'internal scratch']
  %s0 = inlined_call_operand.vmem [shape: bf16[16,784], index: 0, kind: input, shape index: {}]
  %s1 = inlined_call_operand.hbm [shape: bf16[784,512], index: 1, kind: input, shape index: {}]
  %s2 = inlined_call_operand.vmem [shape: f32[1,512], index: 2, kind: input, shape index: {}]
  %s3 = inlined_call_operand.vmem [shape: bf16[512,128], index: 3, kind: input, shape index: {}]
  %s4 = inlined_call_operand.vmem [shape: f32[1,128], index: 4, kind: input, shape index: {}]
  %s5 = inlined_call_operand.vmem [shape: bf16[128,128], index: 5, kind: input, shape index: {}]
  %s6 = inlined_call_operand.vmem [shape: f32[1,128], index: 6, kind: input, shape index: {}]
  %s7 = inlined_call_operand.vmem [shape: f32[16,128], index: 7, kind: output, shape index: {}]
  %s8 = sld [smem:[#allocation0]]
  $region42: #{dnn_forward.1} parent=0
    _
  %s10 = ssub.s32 1, %s8
  %s11 = scalar_select 0, %s10, %s8
  $region1: #{dnn_forward.1} parent=0
    #allocation2 [shape = 'u8[802816]{0}', space=vmem, size = 0xc4000, scoped, tag = 'input window, operand 1, single buffered']
    #allocation3 [shape = 's32[1]{0}', space=sflag, size = 0x4, scoped, tag = 'scoped memory for dnn_forward.1']
    %12 = vsyncpa [#allocation3], 0
    // Predicated region
    $region2: #{dnn_forward.1} parent=1 // pred_check
      _
    $region3: #{dnn_forward.1} parent=1 // pred_check_branch
      %14 = sbr.rel (0) target = $region5
    $region4: #{dnn_forward.1} parent=1 // pred_region
      _
    $region5: #{dnn_forward.1} parent=1 // pred_fallthru
      _
    // Predicated region
    $region6: #{dnn_forward.1} parent=1 // pred_check
      _
    $region7: #{dnn_forward.1} parent=1 // pred_check_branch
      %16 = sbr.rel (0) target = $region9
    $region8: #{dnn_forward.1} parent=1 // pred_region
      %s18 = ssub.s32 25088, 25088
      %19 = vsyncadd [#allocation3], %s18
      %s20 = sshll.u32 [#allocation2], 4
      %s21 = int_to_ptr.vmem [resolvable:$true] %s20
      %26 = dma.hbm_to_vmem [thread:$0]  %s1, 25088, %s21, [#allocation3], 256, 256, 16
    $region9: #{dnn_forward.1} parent=1 // pred_fallthru
      _
    // Predicated region
    $region10: #{dnn_forward.1} parent=1 // pred_check
      _
    $region11: #{dnn_forward.1} parent=1 // pred_check_branch
      %28 = sbr.rel (0) target = $region13
    $region12: #{dnn_forward.1} parent=1 // pred_region
      _
    $region13: #{dnn_forward.1} parent=1 // pred_fallthru
      _
    // Predicated region
    $region14: #{dnn_forward.1} parent=1 // pred_check
      _
    $region15: #{dnn_forward.1} parent=1 // pred_check_branch
      %30 = sbr.rel (0) target = $region17
    $region16: #{dnn_forward.1} parent=1 // pred_region
      _
    $region17: #{dnn_forward.1} parent=1 // pred_fallthru
      _
    // Predicated region
    $region18: #{dnn_forward.1} parent=1 // pred_check
      _
    $region19: #{dnn_forward.1} parent=1 // pred_check_branch
      %32 = sbr.rel (0) target = $region21
    $region20: #{dnn_forward.1} parent=1 // pred_region
      _
    $region21: #{dnn_forward.1} parent=1 // pred_fallthru
      _
    // Predicated region
    $region22: #{dnn_forward.1} parent=1 // pred_check
      _
    $region23: #{dnn_forward.1} parent=1 // pred_check_branch
      %34 = sbr.rel (0) target = $region25
    $region24: #{dnn_forward.1} parent=1 // pred_region
      _
    $region25: #{dnn_forward.1} parent=1 // pred_fallthru
      _
    // Predicated region
    $region26: #{dnn_forward.1} parent=1 // pred_check
      _
    $region27: #{dnn_forward.1} parent=1 // pred_check_branch
      %36 = sbr.rel (0) target = $region29
    $region28: #{dnn_forward.1} parent=1 // pred_region
      _
    $region29: #{dnn_forward.1} parent=1 // pred_fallthru
      _
    // Predicated region
    $region30: #{dnn_forward.1} parent=1 // pred_check
      _
    $region31: #{dnn_forward.1} parent=1 // pred_check_branch
      %38 = sbr.rel (0) target = $region33
    $region32: #{dnn_forward.1} parent=1 // pred_region
      %39 = dma.done [#allocation3], 25088
    $region33: #{dnn_forward.1} parent=1 // pred_fallthru
      _
    %v41 = vld [vmem:[%s0] sm:$0xff]
    %v42 = vld [vmem:[%s0 + $0x8] sm:$0xff]
    %v43 = vld [vmem:[%s0 + $0x10] sm:$0xff]
    %v44 = vld [vmem:[%s0 + $0x18] sm:$0xf]
    %v45 = vld [vmem:[%s0 + $0x1c] sm:$0xff]
    %v46 = vld [vmem:[%s0 + $0x24] sm:$0xff]
    %v47 = vld [vmem:[%s0 + $0x2c] sm:$0xff]
    %v48 = vld [vmem:[%s0 + $0x34] sm:$0xf]
    %v49 = vld [vmem:[#allocation2] sm:$0xff]
    %v50 = vld [vmem:[#allocation2 + $0x8] sm:$0xff]
    %v51 = vld [vmem:[#allocation2 + $0x10] sm:$0xff]
    %v52 = vld [vmem:[#allocation2 + $0x18] sm:$0xff]
    %v53 = vld [vmem:[#allocation2 + $0x20] sm:$0xff]
    %v54 = vld [vmem:[#allocation2 + $0x28] sm:$0xff]
    %v55 = vld [vmem:[#allocation2 + $0x30] sm:$0xff]
    %v56 = vld [vmem:[#allocation2 + $0x38] sm:$0xff]
    %v57 = vld [vmem:[#allocation2 + $0x40] sm:$0xff]
    %v58 = vld [vmem:[#allocation2 + $0x48] sm:$0xff]
    %v59 = vld [vmem:[#allocation2 + $0x50] sm:$0xff]
    %v60 = vld [vmem:[#allocation2 + $0x58] sm:$0xff]
    %v61 = vld [vmem:[#allocation2 + $0x60] sm:$0xff]
    %v62 = vld [vmem:[#allocation2 + $0x68] sm:$0xff]
    %v63 = vld [vmem:[#allocation2 + $0x70] sm:$0xff]
    %v64 = vld [vmem:[#allocation2 + $0x78] sm:$0xff]
    %v65 = vld [vmem:[#allocation2 + $0x80] sm:$0xff]
    %v66 = vld [vmem:[#allocation2 + $0x88] sm:$0xff]
    %v67 = vld [vmem:[#allocation2 + $0x90] sm:$0xff]
    %v68 = vld [vmem:[#allocation2 + $0x98] sm:$0xff]
    %v69 = vld [vmem:[#allocation2 + $0xa0] sm:$0xff]
    %v70 = vld [vmem:[#allocation2 + $0xa8] sm:$0xff]
    %v71 = vld [vmem:[#allocation2 + $0xb0] sm:$0xff]
    %v72 = vld [vmem:[#allocation2 + $0xb8] sm:$0xff]
    %v73 = vld [vmem:[#allocation2 + $0xc0] sm:$0xff]
    %v74 = vld [vmem:[#allocation2 + $0xc8] sm:$0xff]
    %v75 = vld [vmem:[#allocation2 + $0xd0] sm:$0xff]
    %v76 = vld [vmem:[#allocation2 + $0xd8] sm:$0xff]
    %v77 = vld [vmem:[#allocation2 + $0xe0] sm:$0xff]
    %v78 = vld [vmem:[#allocation2 + $0xe8] sm:$0xff]
    %v79 = vld [vmem:[#allocation2 + $0xf0] sm:$0xff]
    %v80 = vld [vmem:[#allocation2 + $0xf8] sm:$0xff]
    %v81 = vld [vmem:[#allocation2 + $0x100] sm:$0xff]
    %v82 = vld [vmem:[#allocation2 + $0x108] sm:$0xff]
    %v83 = vld [vmem:[#allocation2 + $0x110] sm:$0xff]
    %v84 = vld [vmem:[#allocation2 + $0x118] sm:$0xff]
    %v85 = vld [vmem:[#allocation2 + $0x120] sm:$0xff]
    %v86 = vld [vmem:[#allocation2 + $0x128] sm:$0xff]
    %v87 = vld [vmem:[#allocation2 + $0x130] sm:$0xff]
    %v88 = vld [vmem:[#allocation2 + $0x138] sm:$0xff]
    %v89 = vld [vmem:[#allocation2 + $0x140] sm:$0xff]
    %v90 = vld [vmem:[#allocation2 + $0x148] sm:$0xff]
    %v91 = vld [vmem:[#allocation2 + $0x150] sm:$0xff]
    %v92 = vld [vmem:[#allocation2 + $0x158] sm:$0xff]
    %v93 = vld [vmem:[#allocation2 + $0x160] sm:$0xff]
    %v94 = vld [vmem:[#allocation2 + $0x168] sm:$0xff]
    %v95 = vld [vmem:[#allocation2 + $0x170] sm:$0xff]
    %v96 = vld [vmem:[#allocation2 + $0x178] sm:$0xff]
    %v97 = vld [vmem:[#allocation2 + $0x180] sm:$0xff]
    %v98 = vld [vmem:[#allocation2 + $0x188] sm:$0xff]
    %v99 = vld [vmem:[#allocation2 + $0x190] sm:$0xff]
    %v100 = vld [vmem:[#allocation2 + $0x198] sm:$0xff]
    %v101 = vld [vmem:[#allocation2 + $0x1a0] sm:$0xff]
    %v102 = vld [vmem:[#allocation2 + $0x1a8] sm:$0xff]
    %v103 = vld [vmem:[#allocation2 + $0x1b0] sm:$0xff]
    %v104 = vld [vmem:[#allocation2 + $0x1b8] sm:$0xff]
    %v105 = vld [vmem:[#allocation2 + $0x1c0] sm:$0xff]
    %v106 = vld [vmem:[#allocation2 + $0x1c8] sm:$0xff]
    %v107 = vld [vmem:[#allocation2 + $0x1d0] sm:$0xff]
    %v108 = vld [vmem:[#allocation2 + $0x1d8] sm:$0xff]
    %v109 = vld [vmem:[#allocation2 + $0x1e0] sm:$0xff]
    %v110 = vld [vmem:[#allocation2 + $0x1e8] sm:$0xff]
    %v111 = vld [vmem:[#allocation2 + $0x1f0] sm:$0xff]
    %v112 = vld [vmem:[#allocation2 + $0x1f8] sm:$0xff]
    %v113 = vld [vmem:[#allocation2 + $0x200] sm:$0xff]
    %v114 = vld [vmem:[#allocation2 + $0x208] sm:$0xff]
    %v115 = vld [vmem:[#allocation2 + $0x210] sm:$0xff]
    %v116 = vld [vmem:[#allocation2 + $0x218] sm:$0xff]
    %v117 = vld [vmem:[#allocation2 + $0x220] sm:$0xff]
    %v118 = vld [vmem:[#allocation2 + $0x228] sm:$0xff]
    %v119 = vld [vmem:[#allocation2 + $0x230] sm:$0xff]
    %v120 = vld [vmem:[#allocation2 + $0x238] sm:$0xff]
    %v121 = vld [vmem:[#allocation2 + $0x240] sm:$0xff]
    %v122 = vld [vmem:[#allocation2 + $0x248] sm:$0xff]
    %v123 = vld [vmem:[#allocation2 + $0x250] sm:$0xff]
    %v124 = vld [vmem:[#allocation2 + $0x258] sm:$0xff]
    %v125 = vld [vmem:[#allocation2 + $0x260] sm:$0xff]
    %v126 = vld [vmem:[#allocation2 + $0x268] sm:$0xff]
    %v127 = vld [vmem:[#allocation2 + $0x270] sm:$0xff]
    %v128 = vld [vmem:[#allocation2 + $0x278] sm:$0xff]
    %v129 = vld [vmem:[#allocation2 + $0x280] sm:$0xff]
    %v130 = vld [vmem:[#allocation2 + $0x288] sm:$0xff]
    %v131 = vld [vmem:[#allocation2 + $0x290] sm:$0xff]
    %v132 = vld [vmem:[#allocation2 + $0x298] sm:$0xff]
    %v133 = vld [vmem:[#allocation2 + $0x2a0] sm:$0xff]
    %v134 = vld [vmem:[#allocation2 + $0x2a8] sm:$0xff]
    %v135 = vld [vmem:[#allocation2 + $0x2b0] sm:$0xff]
    %v136 = vld [vmem:[#allocation2 + $0x2b8] sm:$0xff]
    %v137 = vld [vmem:[#allocation2 + $0x2c0] sm:$0xff]
    %v138 = vld [vmem:[#allocation2 + $0x2c8] sm:$0xff]
    %v139 = vld [vmem:[#allocation2 + $0x2d0] sm:$0xff]
    %v140 = vld [vmem:[#allocation2 + $0x2d8] sm:$0xff]
    %v141 = vld [vmem:[#allocation2 + $0x2e0] sm:$0xff]
    %v142 = vld [vmem:[#allocation2 + $0x2e8] sm:$0xff]
    %v143 = vld [vmem:[#allocation2 + $0x2f0] sm:$0xff]
    %v144 = vld [vmem:[#allocation2 + $0x2f8] sm:$0xff]
    %v145 = vld [vmem:[#allocation2 + $0x300] sm:$0xff]
    %v146 = vld [vmem:[#allocation2 + $0x308] sm:$0xff]
    %v147 = vld [vmem:[#allocation2 + $0x310] sm:$0xff]
    %v148 = vld [vmem:[#allocation2 + $0x318] sm:$0xff]
    %v149 = vld [vmem:[#allocation2 + $0x320] sm:$0xff]
    %v150 = vld [vmem:[#allocation2 + $0x328] sm:$0xff]
    %v151 = vld [vmem:[#allocation2 + $0x330] sm:$0xff]
    %v152 = vld [vmem:[#allocation2 + $0x338] sm:$0xff]
    %v153 = vld [vmem:[#allocation2 + $0x340] sm:$0xff]
    %v154 = vld [vmem:[#allocation2 + $0x348] sm:$0xff]
    %v155 = vld [vmem:[#allocation2 + $0x350] sm:$0xff]
    %v156 = vld [vmem:[#allocation2 + $0x358] sm:$0xff]
    %v157 = vld [vmem:[#allocation2 + $0x360] sm:$0xff]
    %v158 = vld [vmem:[#allocation2 + $0x368] sm:$0xff]
    %v159 = vld [vmem:[#allocation2 + $0x370] sm:$0xff]
    %v160 = vld [vmem:[#allocation2 + $0x378] sm:$0xff]
    %v161 = vld [vmem:[#allocation2 + $0x380] sm:$0xff]
    %v162 = vld [vmem:[#allocation2 + $0x388] sm:$0xff]
    %v163 = vld [vmem:[#allocation2 + $0x390] sm:$0xff]
    %v164 = vld [vmem:[#allocation2 + $0x398] sm:$0xff]
    %v165 = vld [vmem:[#allocation2 + $0x3a0] sm:$0xff]
    %v166 = vld [vmem:[#allocation2 + $0x3a8] sm:$0xff]
    %v167 = vld [vmem:[#allocation2 + $0x3b0] sm:$0xff]
    %v168 = vld [vmem:[#allocation2 + $0x3b8] sm:$0xff]
    %v169 = vld [vmem:[#allocation2 + $0x3c0] sm:$0xff]
    %v170 = vld [vmem:[#allocation2 + $0x3c8] sm:$0xff]
    %v171 = vld [vmem:[#allocation2 + $0x3d0] sm:$0xff]
    %v172 = vld [vmem:[#allocation2 + $0x3d8] sm:$0xff]
    %v173 = vld [vmem:[#allocation2 + $0x3e0] sm:$0xff]
    %v174 = vld [vmem:[#allocation2 + $0x3e8] sm:$0xff]
    %v175 = vld [vmem:[#allocation2 + $0x3f0] sm:$0xff]
    %v176 = vld [vmem:[#allocation2 + $0x3f8] sm:$0xff]
    %v177 = vld [vmem:[#allocation2 + $0x400] sm:$0xff]
    %v178 = vld [vmem:[#allocation2 + $0x408] sm:$0xff]
    %v179 = vld [vmem:[#allocation2 + $0x410] sm:$0xff]
    %v180 = vld [vmem:[#allocation2 + $0x418] sm:$0xff]
    %v181 = vld [vmem:[#allocation2 + $0x420] sm:$0xff]
    %v182 = vld [vmem:[#allocation2 + $0x428] sm:$0xff]
    %v183 = vld [vmem:[#allocation2 + $0x430] sm:$0xff]
    %v184 = vld [vmem:[#allocation2 + $0x438] sm:$0xff]
    %v185 = vld [vmem:[#allocation2 + $0x440] sm:$0xff]
    %v186 = vld [vmem:[#allocation2 + $0x448] sm:$0xff]
    %v187 = vld [vmem:[#allocation2 + $0x450] sm:$0xff]
    %v188 = vld [vmem:[#allocation2 + $0x458] sm:$0xff]
    %v189 = vld [vmem:[#allocation2 + $0x460] sm:$0xff]
    %v190 = vld [vmem:[#allocation2 + $0x468] sm:$0xff]
    %v191 = vld [vmem:[#allocation2 + $0x470] sm:$0xff]
    %v192 = vld [vmem:[#allocation2 + $0x478] sm:$0xff]
    %v193 = vld [vmem:[#allocation2 + $0x480] sm:$0xff]
    %v194 = vld [vmem:[#allocation2 + $0x488] sm:$0xff]
    %v195 = vld [vmem:[#allocation2 + $0x490] sm:$0xff]
    %v196 = vld [vmem:[#allocation2 + $0x498] sm:$0xff]
    %v197 = vld [vmem:[#allocation2 + $0x4a0] sm:$0xff]
    %v198 = vld [vmem:[#allocation2 + $0x4a8] sm:$0xff]
    %v199 = vld [vmem:[#allocation2 + $0x4b0] sm:$0xff]
    %v200 = vld [vmem:[#allocation2 + $0x4b8] sm:$0xff]
    %v201 = vld [vmem:[#allocation2 + $0x4c0] sm:$0xff]
    %v202 = vld [vmem:[#allocation2 + $0x4c8] sm:$0xff]
    %v203 = vld [vmem:[#allocation2 + $0x4d0] sm:$0xff]
    %v204 = vld [vmem:[#allocation2 + $0x4d8] sm:$0xff]
    %v205 = vld [vmem:[#allocation2 + $0x4e0] sm:$0xff]
    %v206 = vld [vmem:[#allocation2 + $0x4e8] sm:$0xff]
    %v207 = vld [vmem:[#allocation2 + $0x4f0] sm:$0xff]
    %v208 = vld [vmem:[#allocation2 + $0x4f8] sm:$0xff]
    %v209 = vld [vmem:[#allocation2 + $0x500] sm:$0xff]
    %v210 = vld [vmem:[#allocation2 + $0x508] sm:$0xff]
    %v211 = vld [vmem:[#allocation2 + $0x510] sm:$0xff]
    %v212 = vld [vmem:[#allocation2 + $0x518] sm:$0xff]
    %v213 = vld [vmem:[#allocation2 + $0x520] sm:$0xff]
    %v214 = vld [vmem:[#allocation2 + $0x528] sm:$0xff]
    %v215 = vld [vmem:[#allocation2 + $0x530] sm:$0xff]
    %v216 = vld [vmem:[#allocation2 + $0x538] sm:$0xff]
    %v217 = vld [vmem:[#allocation2 + $0x540] sm:$0xff]
    %v218 = vld [vmem:[#allocation2 + $0x548] sm:$0xff]
    %v219 = vld [vmem:[#allocation2 + $0x550] sm:$0xff]
    %v220 = vld [vmem:[#allocation2 + $0x558] sm:$0xff]
    %v221 = vld [vmem:[#allocation2 + $0x560] sm:$0xff]
    %v222 = vld [vmem:[#allocation2 + $0x568] sm:$0xff]
    %v223 = vld [vmem:[#allocation2 + $0x570] sm:$0xff]
    %v224 = vld [vmem:[#allocation2 + $0x578] sm:$0xff]
    %v225 = vld [vmem:[#allocation2 + $0x580] sm:$0xff]
    %v226 = vld [vmem:[#allocation2 + $0x588] sm:$0xff]
    %v227 = vld [vmem:[#allocation2 + $0x590] sm:$0xff]
    %v228 = vld [vmem:[#allocation2 + $0x598] sm:$0xff]
    %v229 = vld [vmem:[#allocation2 + $0x5a0] sm:$0xff]
    %v230 = vld [vmem:[#allocation2 + $0x5a8] sm:$0xff]
    %v231 = vld [vmem:[#allocation2 + $0x5b0] sm:$0xff]
    %v232 = vld [vmem:[#allocation2 + $0x5b8] sm:$0xff]
    %v233 = vld [vmem:[#allocation2 + $0x5c0] sm:$0xff]
    %v234 = vld [vmem:[#allocation2 + $0x5c8] sm:$0xff]
    %v235 = vld [vmem:[#allocation2 + $0x5d0] sm:$0xff]
    %v236 = vld [vmem:[#allocation2 + $0x5d8] sm:$0xff]
    %v237 = vld [vmem:[#allocation2 + $0x5e0] sm:$0xff]
    %v238 = vld [vmem:[#allocation2 + $0x5e8] sm:$0xff]
    %v239 = vld [vmem:[#allocation2 + $0x5f0] sm:$0xff]
    %v240 = vld [vmem:[#allocation2 + $0x5f8] sm:$0xff]
    %v241 = vld [vmem:[#allocation2 + $0x600] sm:$0xff]
    %v242 = vld [vmem:[#allocation2 + $0x608] sm:$0xff]
    %v243 = vld [vmem:[#allocation2 + $0x610] sm:$0xff]
    %v244 = vld [vmem:[#allocation2 + $0x618] sm:$0xff]
    %v245 = vld [vmem:[%s2] sm:$0xf]
    %v247 = vlaneseq
    %v248 = vshrl.u32 %v247, 7
    %v249 = vsub.s32 0, %v248
    %v250 = vrot.slane %v245, %v249
    %v251 = vlaneseq
    %v252 = vshrl.u32 %v251, 7
    %v253 = vsub.s32 1, %v252
    %v254 = vrot.slane %v245, %v253
    %v255 = vlaneseq
    %v256 = vshrl.u32 %v255, 7
    %v257 = vsub.s32 2, %v256
    %v258 = vrot.slane %v245, %v257
    %v259 = vlaneseq
    %v260 = vshrl.u32 %v259, 7
    %v261 = vsub.s32 3, %v260
    %v262 = vrot.slane %v245, %v261
    %v275 = vunpack.c.l.b16 %v41
    %v276 = vunpack.c.h.b16 %v41
    %v277 = vunpack.c.l.b16 %v42
    %v278 = vunpack.c.h.b16 %v42
    %v279 = vunpack.c.l.b16 %v43
    %v280 = vunpack.c.h.b16 %v43
    %v281 = vunpack.c.l.b16 %v44
    %v282 = vunpack.c.l.b16 %v45
    %v283 = vunpack.c.h.b16 %v45
    %v284 = vunpack.c.l.b16 %v46
    %v285 = vunpack.c.h.b16 %v46
    %v286 = vunpack.c.l.b16 %v47
    %v287 = vunpack.c.h.b16 %v47
    %v288 = vunpack.c.l.b16 %v48
    %v289 = vpack.c.b16 %v282, %v275
    %v290 = vpack.c.b16 %v283, %v276
    %v291 = vpack.c.b16 %v284, %v277
    %v292 = vpack.c.b16 %v285, %v278
    %v293 = vpack.c.b16 %v286, %v279
    %v294 = vpack.c.b16 %v287, %v280
    %v295 = vpack.c.b16 %v288, %v281
    %v498 = vunpack.c.l.b16 %v49
    %v499 = vunpack.c.h.b16 %v49
    %v500 = vunpack.c.l.b16 %v50
    %v501 = vunpack.c.h.b16 %v50
    %v502 = vunpack.c.l.b16 %v51
    %v503 = vunpack.c.h.b16 %v51
    %v504 = vunpack.c.l.b16 %v52
    %v505 = vunpack.c.h.b16 %v52
    %v506 = vunpack.c.l.b16 %v53
    %v507 = vunpack.c.h.b16 %v53
    %v508 = vunpack.c.l.b16 %v54
    %v509 = vunpack.c.h.b16 %v54
    %v510 = vunpack.c.l.b16 %v55
    %v511 = vunpack.c.h.b16 %v55
    %v512 = vunpack.c.l.b16 %v56
    %v513 = vunpack.c.h.b16 %v56
    %v514 = vunpack.c.l.b16 %v57
    %v515 = vunpack.c.h.b16 %v57
    %v516 = vunpack.c.l.b16 %v58
    %v517 = vunpack.c.h.b16 %v58
    %v518 = vunpack.c.l.b16 %v59
    %v519 = vunpack.c.h.b16 %v59
    %v520 = vunpack.c.l.b16 %v60
    %v521 = vunpack.c.h.b16 %v60
    %v522 = vunpack.c.l.b16 %v61
    %v523 = vunpack.c.h.b16 %v61
    %v524 = vunpack.c.l.b16 %v62
    %v525 = vunpack.c.h.b16 %v62
    %v526 = vunpack.c.l.b16 %v63
    %v527 = vunpack.c.h.b16 %v63
    %v528 = vunpack.c.l.b16 %v64
    %v529 = vunpack.c.h.b16 %v64
    %v530 = vunpack.c.l.b16 %v65
    %v531 = vunpack.c.h.b16 %v65
    %v532 = vunpack.c.l.b16 %v66
    %v533 = vunpack.c.h.b16 %v66
    %v534 = vunpack.c.l.b16 %v67
    %v535 = vunpack.c.h.b16 %v67
    %v536 = vunpack.c.l.b16 %v68
    %v537 = vunpack.c.h.b16 %v68
    %v538 = vunpack.c.l.b16 %v69
    %v539 = vunpack.c.h.b16 %v69
    %v540 = vunpack.c.l.b16 %v70
    %v541 = vunpack.c.h.b16 %v70
    %v542 = vunpack.c.l.b16 %v71
    %v543 = vunpack.c.h.b16 %v71
    %v544 = vunpack.c.l.b16 %v72
    %v545 = vunpack.c.h.b16 %v72
    %v546 = vunpack.c.l.b16 %v73
    %v547 = vunpack.c.h.b16 %v73
    %v548 = vunpack.c.l.b16 %v74
    %v549 = vunpack.c.h.b16 %v74
    %v550 = vunpack.c.l.b16 %v75
    %v551 = vunpack.c.h.b16 %v75
    %v552 = vunpack.c.l.b16 %v76
    %v553 = vunpack.c.h.b16 %v76
    %v554 = vunpack.c.l.b16 %v77
    %v555 = vunpack.c.h.b16 %v77
    %v556 = vunpack.c.l.b16 %v78
    %v557 = vunpack.c.h.b16 %v78
    %v558 = vunpack.c.l.b16 %v79
    %v559 = vunpack.c.h.b16 %v79
    %v560 = vunpack.c.l.b16 %v80
    %v561 = vunpack.c.h.b16 %v80
    %v562 = vunpack.c.l.b16 %v81
    %v563 = vunpack.c.h.b16 %v81
    %v564 = vunpack.c.l.b16 %v82
    %v565 = vunpack.c.h.b16 %v82
    %v566 = vunpack.c.l.b16 %v83
    %v567 = vunpack.c.h.b16 %v83
    %v568 = vunpack.c.l.b16 %v84
    %v569 = vunpack.c.h.b16 %v84
    %v570 = vunpack.c.l.b16 %v85
    %v571 = vunpack.c.h.b16 %v85
    %v572 = vunpack.c.l.b16 %v86
    %v573 = vunpack.c.h.b16 %v86
    %v574 = vunpack.c.l.b16 %v87
    %v575 = vunpack.c.h.b16 %v87
    %v576 = vunpack.c.l.b16 %v88
    %v577 = vunpack.c.h.b16 %v88
    %v578 = vunpack.c.l.b16 %v89
    %v579 = vunpack.c.h.b16 %v89
    %v580 = vunpack.c.l.b16 %v90
    %v581 = vunpack.c.h.b16 %v90
    %v582 = vunpack.c.l.b16 %v91
    %v583 = vunpack.c.h.b16 %v91
    %v584 = vunpack.c.l.b16 %v92
    %v585 = vunpack.c.h.b16 %v92
    %v586 = vunpack.c.l.b16 %v93
    %v587 = vunpack.c.h.b16 %v93
    %v588 = vunpack.c.l.b16 %v94
    %v589 = vunpack.c.h.b16 %v94
    %v590 = vunpack.c.l.b16 %v95
    %v591 = vunpack.c.h.b16 %v95
    %v592 = vunpack.c.l.b16 %v96
    %v593 = vunpack.c.h.b16 %v96
    %v594 = vunpack.c.l.b16 %v97
    %v595 = vunpack.c.h.b16 %v97
    %v596 = vunpack.c.l.b16 %v98
    %v597 = vunpack.c.h.b16 %v98
    %v598 = vunpack.c.l.b16 %v99
    %v599 = vunpack.c.h.b16 %v99
    %v600 = vunpack.c.l.b16 %v100
    %v601 = vunpack.c.h.b16 %v100
    %v602 = vunpack.c.l.b16 %v101
    %v603 = vunpack.c.h.b16 %v101
    %v604 = vunpack.c.l.b16 %v102
    %v605 = vunpack.c.h.b16 %v102
    %v606 = vunpack.c.l.b16 %v103
    %v607 = vunpack.c.h.b16 %v103
    %v608 = vunpack.c.l.b16 %v104
    %v609 = vunpack.c.h.b16 %v104
    %v610 = vunpack.c.l.b16 %v105
    %v611 = vunpack.c.h.b16 %v105
    %v612 = vunpack.c.l.b16 %v106
    %v613 = vunpack.c.h.b16 %v106
    %v614 = vunpack.c.l.b16 %v107
    %v615 = vunpack.c.h.b16 %v107
    %v616 = vunpack.c.l.b16 %v108
    %v617 = vunpack.c.h.b16 %v108
    %v618 = vunpack.c.l.b16 %v109
    %v619 = vunpack.c.h.b16 %v109
    %v620 = vunpack.c.l.b16 %v110
    %v621 = vunpack.c.h.b16 %v110
    %v622 = vunpack.c.l.b16 %v111
    %v623 = vunpack.c.h.b16 %v111
    %v624 = vunpack.c.l.b16 %v112
    %v625 = vunpack.c.h.b16 %v112
    %v626 = vunpack.c.l.b16 %v113
    %v627 = vunpack.c.h.b16 %v113
    %v628 = vunpack.c.l.b16 %v114
    %v629 = vunpack.c.h.b16 %v114
    %v630 = vunpack.c.l.b16 %v115
    %v631 = vunpack.c.h.b16 %v115
    %v632 = vunpack.c.l.b16 %v116
    %v633 = vunpack.c.h.b16 %v116
    %v634 = vunpack.c.l.b16 %v117
    %v635 = vunpack.c.h.b16 %v117
    %v636 = vunpack.c.l.b16 %v118
    %v637 = vunpack.c.h.b16 %v118
    %v638 = vunpack.c.l.b16 %v119
    %v639 = vunpack.c.h.b16 %v119
    %v640 = vunpack.c.l.b16 %v120
    %v641 = vunpack.c.h.b16 %v120
    %v642 = vunpack.c.l.b16 %v121
    %v643 = vunpack.c.h.b16 %v121
    %v644 = vunpack.c.l.b16 %v122
    %v645 = vunpack.c.h.b16 %v122
    %v646 = vunpack.c.l.b16 %v123
    %v647 = vunpack.c.h.b16 %v123
    %v648 = vunpack.c.l.b16 %v124
    %v649 = vunpack.c.h.b16 %v124
    %v650 = vunpack.c.l.b16 %v125
    %v651 = vunpack.c.h.b16 %v125
    %v652 = vunpack.c.l.b16 %v126
    %v653 = vunpack.c.h.b16 %v126
    %v654 = vunpack.c.l.b16 %v127
    %v655 = vunpack.c.h.b16 %v127
    %v656 = vunpack.c.l.b16 %v128
    %v657 = vunpack.c.h.b16 %v128
    %v658 = vunpack.c.l.b16 %v129
    %v659 = vunpack.c.h.b16 %v129
    %v660 = vunpack.c.l.b16 %v130
    %v661 = vunpack.c.h.b16 %v130
    %v662 = vunpack.c.l.b16 %v131
    %v663 = vunpack.c.h.b16 %v131
    %v664 = vunpack.c.l.b16 %v132
    %v665 = vunpack.c.h.b16 %v132
    %v666 = vunpack.c.l.b16 %v133
    %v667 = vunpack.c.h.b16 %v133
    %v668 = vunpack.c.l.b16 %v134
    %v669 = vunpack.c.h.b16 %v134
    %v670 = vunpack.c.l.b16 %v135
    %v671 = vunpack.c.h.b16 %v135
    %v672 = vunpack.c.l.b16 %v136
    %v673 = vunpack.c.h.b16 %v136
    %v674 = vunpack.c.l.b16 %v137
    %v675 = vunpack.c.h.b16 %v137
    %v676 = vunpack.c.l.b16 %v138
    %v677 = vunpack.c.h.b16 %v138
    %v678 = vunpack.c.l.b16 %v139
    %v679 = vunpack.c.h.b16 %v139
    %v680 = vunpack.c.l.b16 %v140
    %v681 = vunpack.c.h.b16 %v140
    %v682 = vunpack.c.l.b16 %v141
    %v683 = vunpack.c.h.b16 %v141
    %v684 = vunpack.c.l.b16 %v142
    %v685 = vunpack.c.h.b16 %v142
    %v686 = vunpack.c.l.b16 %v143
    %v687 = vunpack.c.h.b16 %v143
    %v688 = vunpack.c.l.b16 %v144
    %v689 = vunpack.c.h.b16 %v144
    %v690 = vunpack.c.l.b16 %v145
    %v691 = vunpack.c.h.b16 %v145
    %v692 = vunpack.c.l.b16 %v146
    %v693 = vunpack.c.h.b16 %v146
    %v694 = vunpack.c.l.b16 %v147
    %v695 = vunpack.c.h.b16 %v147
    %v696 = vunpack.c.l.b16 %v148
    %v697 = vunpack.c.h.b16 %v148
    %v698 = vunpack.c.l.b16 %v149
    %v699 = vunpack.c.h.b16 %v149
    %v700 = vunpack.c.l.b16 %v150
    %v701 = vunpack.c.h.b16 %v150
    %v702 = vunpack.c.l.b16 %v151
    %v703 = vunpack.c.h.b16 %v151
    %v704 = vunpack.c.l.b16 %v152
    %v705 = vunpack.c.h.b16 %v152
    %v706 = vunpack.c.l.b16 %v153
    %v707 = vunpack.c.h.b16 %v153
    %v708 = vunpack.c.l.b16 %v154
    %v709 = vunpack.c.h.b16 %v154
    %v710 = vunpack.c.l.b16 %v155
    %v711 = vunpack.c.h.b16 %v155
    %v712 = vunpack.c.l.b16 %v156
    %v713 = vunpack.c.h.b16 %v156
    %v714 = vunpack.c.l.b16 %v157
    %v715 = vunpack.c.h.b16 %v157
    %v716 = vunpack.c.l.b16 %v158
    %v717 = vunpack.c.h.b16 %v158
    %v718 = vunpack.c.l.b16 %v159
    %v719 = vunpack.c.h.b16 %v159
    %v720 = vunpack.c.l.b16 %v160
    %v721 = vunpack.c.h.b16 %v160
    %v722 = vunpack.c.l.b16 %v161
    %v723 = vunpack.c.h.b16 %v161
    %v724 = vunpack.c.l.b16 %v162
    %v725 = vunpack.c.h.b16 %v162
    %v726 = vunpack.c.l.b16 %v163
    %v727 = vunpack.c.h.b16 %v163
    %v728 = vunpack.c.l.b16 %v164
    %v729 = vunpack.c.h.b16 %v164
    %v730 = vunpack.c.l.b16 %v165
    %v731 = vunpack.c.h.b16 %v165
    %v732 = vunpack.c.l.b16 %v166
    %v733 = vunpack.c.h.b16 %v166
    %v734 = vunpack.c.l.b16 %v167
    %v735 = vunpack.c.h.b16 %v167
    %v736 = vunpack.c.l.b16 %v168
    %v737 = vunpack.c.h.b16 %v168
    %v738 = vunpack.c.l.b16 %v169
    %v739 = vunpack.c.h.b16 %v169
    %v740 = vunpack.c.l.b16 %v170
    %v741 = vunpack.c.h.b16 %v170
    %v742 = vunpack.c.l.b16 %v171
    %v743 = vunpack.c.h.b16 %v171
    %v744 = vunpack.c.l.b16 %v172
    %v745 = vunpack.c.h.b16 %v172
    %v746 = vunpack.c.l.b16 %v173
    %v747 = vunpack.c.h.b16 %v173
    %v748 = vunpack.c.l.b16 %v174
    %v749 = vunpack.c.h.b16 %v174
    %v750 = vunpack.c.l.b16 %v175
    %v751 = vunpack.c.h.b16 %v175
    %v752 = vunpack.c.l.b16 %v176
    %v753 = vunpack.c.h.b16 %v176
    %v754 = vunpack.c.l.b16 %v177
    %v755 = vunpack.c.h.b16 %v177
    %v756 = vunpack.c.l.b16 %v178
    %v757 = vunpack.c.h.b16 %v178
    %v758 = vunpack.c.l.b16 %v179
    %v759 = vunpack.c.h.b16 %v179
    %v760 = vunpack.c.l.b16 %v180
    %v761 = vunpack.c.h.b16 %v180
    %v762 = vunpack.c.l.b16 %v181
    %v763 = vunpack.c.h.b16 %v181
    %v764 = vunpack.c.l.b16 %v182
    %v765 = vunpack.c.h.b16 %v182
    %v766 = vunpack.c.l.b16 %v183
    %v767 = vunpack.c.h.b16 %v183
    %v768 = vunpack.c.l.b16 %v184
    %v769 = vunpack.c.h.b16 %v184
    %v770 = vunpack.c.l.b16 %v185
    %v771 = vunpack.c.h.b16 %v185
    %v772 = vunpack.c.l.b16 %v186
    %v773 = vunpack.c.h.b16 %v186
    %v774 = vunpack.c.l.b16 %v187
    %v775 = vunpack.c.h.b16 %v187
    %v776 = vunpack.c.l.b16 %v188
    %v777 = vunpack.c.h.b16 %v188
    %v778 = vunpack.c.l.b16 %v189
    %v779 = vunpack.c.h.b16 %v189
    %v780 = vunpack.c.l.b16 %v190
    %v781 = vunpack.c.h.b16 %v190
    %v782 = vunpack.c.l.b16 %v191
    %v783 = vunpack.c.h.b16 %v191
    %v784 = vunpack.c.l.b16 %v192
    %v785 = vunpack.c.h.b16 %v192
    %v786 = vunpack.c.l.b16 %v193
    %v787 = vunpack.c.h.b16 %v193
    %v788 = vunpack.c.l.b16 %v194
    %v789 = vunpack.c.h.b16 %v194
    %v790 = vunpack.c.l.b16 %v195
    %v791 = vunpack.c.h.b16 %v195
    %v792 = vunpack.c.l.b16 %v196
    %v793 = vunpack.c.h.b16 %v196
    %v794 = vunpack.c.l.b16 %v197
    %v795 = vunpack.c.h.b16 %v197
    %v796 = vunpack.c.l.b16 %v198
    %v797 = vunpack.c.h.b16 %v198
    %v798 = vunpack.c.l.b16 %v199
    %v799 = vunpack.c.h.b16 %v199
    %v800 = vunpack.c.l.b16 %v200
    %v801 = vunpack.c.h.b16 %v200
    %v802 = vunpack.c.l.b16 %v201
    %v803 = vunpack.c.h.b16 %v201
    %v804 = vunpack.c.l.b16 %v202
    %v805 = vunpack.c.h.b16 %v202
    %v806 = vunpack.c.l.b16 %v203
    %v807 = vunpack.c.h.b16 %v203
    %v808 = vunpack.c.l.b16 %v204
    %v809 = vunpack.c.h.b16 %v204
    %v810 = vunpack.c.l.b16 %v205
    %v811 = vunpack.c.h.b16 %v205
    %v812 = vunpack.c.l.b16 %v206
    %v813 = vunpack.c.h.b16 %v206
    %v814 = vunpack.c.l.b16 %v207
    %v815 = vunpack.c.h.b16 %v207
    %v816 = vunpack.c.l.b16 %v208
    %v817 = vunpack.c.h.b16 %v208
    %v818 = vunpack.c.l.b16 %v209
    %v819 = vunpack.c.h.b16 %v209
    %v820 = vunpack.c.l.b16 %v210
    %v821 = vunpack.c.h.b16 %v210
    %v822 = vunpack.c.l.b16 %v211
    %v823 = vunpack.c.h.b16 %v211
    %v824 = vunpack.c.l.b16 %v212
    %v825 = vunpack.c.h.b16 %v212
    %v826 = vunpack.c.l.b16 %v213
    %v827 = vunpack.c.h.b16 %v213
    %v828 = vunpack.c.l.b16 %v214
    %v829 = vunpack.c.h.b16 %v214
    %v830 = vunpack.c.l.b16 %v215
    %v831 = vunpack.c.h.b16 %v215
    %v832 = vunpack.c.l.b16 %v216
    %v833 = vunpack.c.h.b16 %v216
    %v834 = vunpack.c.l.b16 %v217
    %v835 = vunpack.c.h.b16 %v217
    %v836 = vunpack.c.l.b16 %v218
    %v837 = vunpack.c.h.b16 %v218
    %v838 = vunpack.c.l.b16 %v219
    %v839 = vunpack.c.h.b16 %v219
    %v840 = vunpack.c.l.b16 %v220
    %v841 = vunpack.c.h.b16 %v220
    %v842 = vunpack.c.l.b16 %v221
    %v843 = vunpack.c.h.b16 %v221
    %v844 = vunpack.c.l.b16 %v222
    %v845 = vunpack.c.h.b16 %v222
    %v846 = vunpack.c.l.b16 %v223
    %v847 = vunpack.c.h.b16 %v223
    %v848 = vunpack.c.l.b16 %v224
    %v849 = vunpack.c.h.b16 %v224
    %v850 = vunpack.c.l.b16 %v225
    %v851 = vunpack.c.h.b16 %v225
    %v852 = vunpack.c.l.b16 %v226
    %v853 = vunpack.c.h.b16 %v226
    %v854 = vunpack.c.l.b16 %v227
    %v855 = vunpack.c.h.b16 %v227
    %v856 = vunpack.c.l.b16 %v228
    %v857 = vunpack.c.h.b16 %v228
    %v858 = vunpack.c.l.b16 %v229
    %v859 = vunpack.c.h.b16 %v229
    %v860 = vunpack.c.l.b16 %v230
    %v861 = vunpack.c.h.b16 %v230
    %v862 = vunpack.c.l.b16 %v231
    %v863 = vunpack.c.h.b16 %v231
    %v864 = vunpack.c.l.b16 %v232
    %v865 = vunpack.c.h.b16 %v232
    %v866 = vunpack.c.l.b16 %v233
    %v867 = vunpack.c.h.b16 %v233
    %v868 = vunpack.c.l.b16 %v234
    %v869 = vunpack.c.h.b16 %v234
    %v870 = vunpack.c.l.b16 %v235
    %v871 = vunpack.c.h.b16 %v235
    %v872 = vunpack.c.l.b16 %v236
    %v873 = vunpack.c.h.b16 %v236
    %v874 = vunpack.c.l.b16 %v237
    %v875 = vunpack.c.h.b16 %v237
    %v876 = vunpack.c.l.b16 %v238
    %v877 = vunpack.c.h.b16 %v238
    %v878 = vunpack.c.l.b16 %v239
    %v879 = vunpack.c.h.b16 %v239
    %v880 = vunpack.c.l.b16 %v240
    %v881 = vunpack.c.h.b16 %v240
    %v882 = vunpack.c.l.b16 %v241
    %v883 = vunpack.c.h.b16 %v241
    %v884 = vunpack.c.l.b16 %v242
    %v885 = vunpack.c.h.b16 %v242
    %v886 = vunpack.c.l.b16 %v243
    %v887 = vunpack.c.h.b16 %v243
    %v888 = vunpack.c.l.b16 %v244
    %v889 = vunpack.c.h.b16 %v244
    %v890 = vpack.c.b16 %v502, %v498
    %v891 = vpack.c.b16 %v503, %v499
    %v892 = vpack.c.b16 %v504, %v500
    %v893 = vpack.c.b16 %v505, %v501
    %v894 = vpack.c.b16 %v510, %v506
    %v895 = vpack.c.b16 %v511, %v507
    %v896 = vpack.c.b16 %v512, %v508
    %v897 = vpack.c.b16 %v513, %v509
    %v898 = vpack.c.b16 %v518, %v514
    %v899 = vpack.c.b16 %v519, %v515
    %v900 = vpack.c.b16 %v520, %v516
    %v901 = vpack.c.b16 %v521, %v517
    %v902 = vpack.c.b16 %v526, %v522
    %v903 = vpack.c.b16 %v527, %v523
    %v904 = vpack.c.b16 %v528, %v524
    %v905 = vpack.c.b16 %v529, %v525
    %v906 = vpack.c.b16 %v534, %v530
    %v907 = vpack.c.b16 %v535, %v531
    %v908 = vpack.c.b16 %v536, %v532
    %v909 = vpack.c.b16 %v537, %v533
    %v910 = vpack.c.b16 %v542, %v538
    %v911 = vpack.c.b16 %v543, %v539
    %v912 = vpack.c.b16 %v544, %v540
    %v913 = vpack.c.b16 %v545, %v541
    %v914 = vpack.c.b16 %v550, %v546
    %v915 = vpack.c.b16 %v551, %v547
    %v916 = vpack.c.b16 %v552, %v548
    %v917 = vpack.c.b16 %v553, %v549
    %v918 = vpack.c.b16 %v558, %v554
    %v919 = vpack.c.b16 %v559, %v555
    %v920 = vpack.c.b16 %v560, %v556
    %v921 = vpack.c.b16 %v561, %v557
    %v922 = vpack.c.b16 %v566, %v562
    %v923 = vpack.c.b16 %v567, %v563
    %v924 = vpack.c.b16 %v568, %v564
    %v925 = vpack.c.b16 %v569, %v565
    %v926 = vpack.c.b16 %v574, %v570
    %v927 = vpack.c.b16 %v575, %v571
    %v928 = vpack.c.b16 %v576, %v572
    %v929 = vpack.c.b16 %v577, %v573
    %v930 = vpack.c.b16 %v582, %v578
    %v931 = vpack.c.b16 %v583, %v579
    %v932 = vpack.c.b16 %v584, %v580
    %v933 = vpack.c.b16 %v585, %v581
    %v934 = vpack.c.b16 %v590, %v586
    %v935 = vpack.c.b16 %v591, %v587
    %v936 = vpack.c.b16 %v592, %v588
    %v937 = vpack.c.b16 %v593, %v589
    %v938 = vpack.c.b16 %v598, %v594
    %v939 = vpack.c.b16 %v599, %v595
    %v940 = vpack.c.b16 %v600, %v596
    %v941 = vpack.c.b16 %v601, %v597
    %v942 = vpack.c.b16 %v606, %v602
    %v943 = vpack.c.b16 %v607, %v603
    %v944 = vpack.c.b16 %v608, %v604
    %v945 = vpack.c.b16 %v609, %v605
    %v946 = vpack.c.b16 %v614, %v610
    %v947 = vpack.c.b16 %v615, %v611
    %v948 = vpack.c.b16 %v616, %v612
    %v949 = vpack.c.b16 %v617, %v613
    %v950 = vpack.c.b16 %v622, %v618
    %v951 = vpack.c.b16 %v623, %v619
    %v952 = vpack.c.b16 %v624, %v620
    %v953 = vpack.c.b16 %v625, %v621
    %v954 = vpack.c.b16 %v630, %v626
    %v955 = vpack.c.b16 %v631, %v627
    %v956 = vpack.c.b16 %v632, %v628
    %v957 = vpack.c.b16 %v633, %v629
    %v958 = vpack.c.b16 %v638, %v634
    %v959 = vpack.c.b16 %v639, %v635
    %v960 = vpack.c.b16 %v640, %v636
    %v961 = vpack.c.b16 %v641, %v637
    %v962 = vpack.c.b16 %v646, %v642
    %v963 = vpack.c.b16 %v647, %v643
    %v964 = vpack.c.b16 %v648, %v644
    %v965 = vpack.c.b16 %v649, %v645
    %v966 = vpack.c.b16 %v654, %v650
    %v967 = vpack.c.b16 %v655, %v651
    %v968 = vpack.c.b16 %v656, %v652
    %v969 = vpack.c.b16 %v657, %v653
    %v970 = vpack.c.b16 %v662, %v658
    %v971 = vpack.c.b16 %v663, %v659
    %v972 = vpack.c.b16 %v664, %v660
    %v973 = vpack.c.b16 %v665, %v661
    %v974 = vpack.c.b16 %v670, %v666
    %v975 = vpack.c.b16 %v671, %v667
    %v976 = vpack.c.b16 %v672, %v668
    %v977 = vpack.c.b16 %v673, %v669
    %v978 = vpack.c.b16 %v678, %v674
    %v979 = vpack.c.b16 %v679, %v675
    %v980 = vpack.c.b16 %v680, %v676
    %v981 = vpack.c.b16 %v681, %v677
    %v982 = vpack.c.b16 %v686, %v682
    %v983 = vpack.c.b16 %v687, %v683
    %v984 = vpack.c.b16 %v688, %v684
    %v985 = vpack.c.b16 %v689, %v685
    %v986 = vpack.c.b16 %v694, %v690
    %v987 = vpack.c.b16 %v695, %v691
    %v988 = vpack.c.b16 %v696, %v692
    %v989 = vpack.c.b16 %v697, %v693
    %v990 = vpack.c.b16 %v702, %v698
    %v991 = vpack.c.b16 %v703, %v699
    %v992 = vpack.c.b16 %v704, %v700
    %v993 = vpack.c.b16 %v705, %v701
    %v994 = vpack.c.b16 %v710, %v706
    %v995 = vpack.c.b16 %v711, %v707
    %v996 = vpack.c.b16 %v712, %v708
    %v997 = vpack.c.b16 %v713, %v709
    %v998 = vpack.c.b16 %v718, %v714
    %v999 = vpack.c.b16 %v719, %v715
    %v1000 = vpack.c.b16 %v720, %v716
    %v1001 = vpack.c.b16 %v721, %v717
    %v1002 = vpack.c.b16 %v726, %v722
    %v1003 = vpack.c.b16 %v727, %v723
    %v1004 = vpack.c.b16 %v728, %v724
    %v1005 = vpack.c.b16 %v729, %v725
    %v1006 = vpack.c.b16 %v734, %v730
    %v1007 = vpack.c.b16 %v735, %v731
    %v1008 = vpack.c.b16 %v736, %v732
    %v1009 = vpack.c.b16 %v737, %v733
    %v1010 = vpack.c.b16 %v742, %v738
    %v1011 = vpack.c.b16 %v743, %v739
    %v1012 = vpack.c.b16 %v744, %v740
    %v1013 = vpack.c.b16 %v745, %v741
    %v1014 = vpack.c.b16 %v750, %v746
    %v1015 = vpack.c.b16 %v751, %v747
    %v1016 = vpack.c.b16 %v752, %v748
    %v1017 = vpack.c.b16 %v753, %v749
    %v1018 = vpack.c.b16 %v758, %v754
    %v1019 = vpack.c.b16 %v759, %v755
    %v1020 = vpack.c.b16 %v760, %v756
    %v1021 = vpack.c.b16 %v761, %v757
    %v1022 = vpack.c.b16 %v766, %v762
    %v1023 = vpack.c.b16 %v767, %v763
    %v1024 = vpack.c.b16 %v768, %v764
    %v1025 = vpack.c.b16 %v769, %v765
    %v1026 = vpack.c.b16 %v774, %v770
    %v1027 = vpack.c.b16 %v775, %v771
    %v1028 = vpack.c.b16 %v776, %v772
    %v1029 = vpack.c.b16 %v777, %v773
    %v1030 = vpack.c.b16 %v782, %v778
    %v1031 = vpack.c.b16 %v783, %v779
    %v1032 = vpack.c.b16 %v784, %v780
    %v1033 = vpack.c.b16 %v785, %v781
    %v1034 = vpack.c.b16 %v790, %v786
    %v1035 = vpack.c.b16 %v791, %v787
    %v1036 = vpack.c.b16 %v792, %v788
    %v1037 = vpack.c.b16 %v793, %v789
    %v1038 = vpack.c.b16 %v798, %v794
    %v1039 = vpack.c.b16 %v799, %v795
    %v1040 = vpack.c.b16 %v800, %v796
    %v1041 = vpack.c.b16 %v801, %v797
    %v1042 = vpack.c.b16 %v806, %v802
    %v1043 = vpack.c.b16 %v807, %v803
    %v1044 = vpack.c.b16 %v808, %v804
    %v1045 = vpack.c.b16 %v809, %v805
    %v1046 = vpack.c.b16 %v814, %v810
    %v1047 = vpack.c.b16 %v815, %v811
    %v1048 = vpack.c.b16 %v816, %v812
    %v1049 = vpack.c.b16 %v817, %v813
    %v1050 = vpack.c.b16 %v822, %v818
    %v1051 = vpack.c.b16 %v823, %v819
    %v1052 = vpack.c.b16 %v824, %v820
    %v1053 = vpack.c.b16 %v825, %v821
    %v1054 = vpack.c.b16 %v830, %v826
    %v1055 = vpack.c.b16 %v831, %v827
    %v1056 = vpack.c.b16 %v832, %v828
    %v1057 = vpack.c.b16 %v833, %v829
    %v1058 = vpack.c.b16 %v838, %v834
    %v1059 = vpack.c.b16 %v839, %v835
    %v1060 = vpack.c.b16 %v840, %v836
    %v1061 = vpack.c.b16 %v841, %v837
    %v1062 = vpack.c.b16 %v846, %v842
    %v1063 = vpack.c.b16 %v847, %v843
    %v1064 = vpack.c.b16 %v848, %v844
    %v1065 = vpack.c.b16 %v849, %v845
    %v1066 = vpack.c.b16 %v854, %v850
    %v1067 = vpack.c.b16 %v855, %v851
    %v1068 = vpack.c.b16 %v856, %v852
    %v1069 = vpack.c.b16 %v857, %v853
    %v1070 = vpack.c.b16 %v862, %v858
    %v1071 = vpack.c.b16 %v863, %v859
    %v1072 = vpack.c.b16 %v864, %v860
    %v1073 = vpack.c.b16 %v865, %v861
    %v1074 = vpack.c.b16 %v870, %v866
    %v1075 = vpack.c.b16 %v871, %v867
    %v1076 = vpack.c.b16 %v872, %v868
    %v1077 = vpack.c.b16 %v873, %v869
    %v1078 = vpack.c.b16 %v878, %v874
    %v1079 = vpack.c.b16 %v879, %v875
    %v1080 = vpack.c.b16 %v880, %v876
    %v1081 = vpack.c.b16 %v881, %v877
    %v1082 = vpack.c.b16 %v886, %v882
    %v1083 = vpack.c.b16 %v887, %v883
    %v1084 = vpack.c.b16 %v888, %v884
    %v1085 = vpack.c.b16 %v889, %v885
    %vm1282 = vcmask 130048
    %v1284 = vsel %vm1282, %v295, 0
    %1286 = vmatprep.subr.bf16.mxu0 %v919
    %1287 = vmatpush1.bf16.msra.mxu0 %v918
    %1288 = vmatprep.subr.bf16.mxu0 %v915
    %1289 = vmatpush1.bf16.msra.mxu0 %v914
    %1290 = vmatprep.subr.bf16.mxu0 %v911
    %1291 = vmatpush1.bf16.msra.mxu0 %v910
    %1292 = vmatprep.subr.bf16.mxu0 %v907
    %1293 = vmatpush1.bf16.msra.mxu0 %v906
    %1294 = vmatprep.subr.bf16.mxu0 %v903
    %1295 = vmatpush1.bf16.msra.mxu0 %v902
    %1296 = vmatprep.subr.bf16.mxu0 %v899
    %1297 = vmatpush1.bf16.msra.mxu0 %v898
    %1298 = vmatprep.subr.bf16.mxu0 %v895
    %1299 = vmatpush1.bf16.msra.mxu0 %v894
    %1300 = vmatprep.subr.bf16.mxu0 %v891
    %1301 = vmatpush1.bf16.msra.mxu0 %v890
    %1302 = vmatprep.subr.bf16.mxu0 %v951
    %1303 = vmatpush2.bf16.msra.mxu0 %v950
    %1304 = vmatprep.subr.bf16.mxu0 %v947
    %1305 = vmatpush2.bf16.msra.mxu0 %v946
    %1306 = vmatprep.subr.bf16.mxu0 %v943
    %1307 = vmatpush2.bf16.msra.mxu0 %v942
    %1308 = vmatprep.subr.bf16.mxu0 %v939
    %1309 = vmatpush2.bf16.msra.mxu0 %v938
    %1310 = vmatprep.subr.bf16.mxu0 %v935
    %1311 = vmatpush2.bf16.msra.mxu0 %v934
    %1312 = vmatprep.subr.bf16.mxu0 %v931
    %1313 = vmatpush2.bf16.msra.mxu0 %v930
    %1314 = vmatprep.subr.bf16.mxu0 %v927
    %1315 = vmatpush2.bf16.msra.mxu0 %v926
    %1316 = vmatprep.subr.bf16.mxu0 %v923
    %1317 = vmatpush2.bf16.msra.mxu0 %v922
    %1318 = vmatprep.mubr.bf16.mxu0 %v290
    %1319 = vmatmul.mubr.bf16.gmra.mxu0 %v289
    %v1320 = vpop.f32.mrf.mxu0
    %v1321 = vadd.f32 %v250, %v1320
    %v1322 = vpop.f32.mrf.mxu0
    %v1323 = vadd.f32 %v254, %v1322
    %v1324 = vpop.f32.mrf.mxu0
    %v1325 = vadd.f32 %v250, %v1324
    %v1326 = vpop.f32.mrf.mxu0
    %v1327 = vadd.f32 %v254, %v1326
    %1328 = vdwg.mxu0
    %1329 = vmatprep.subr.bf16.mxu0 %v983
    %1330 = vmatpush1.bf16.msra.mxu0 %v982
    %1331 = vmatprep.subr.bf16.mxu0 %v979
    %1332 = vmatpush1.bf16.msra.mxu0 %v978
    %1333 = vmatprep.subr.bf16.mxu0 %v975
    %1334 = vmatpush1.bf16.msra.mxu0 %v974
    %1335 = vmatprep.subr.bf16.mxu0 %v971
    %1336 = vmatpush1.bf16.msra.mxu0 %v970
    %1337 = vmatprep.subr.bf16.mxu0 %v967
    %1338 = vmatpush1.bf16.msra.mxu0 %v966
    %1339 = vmatprep.subr.bf16.mxu0 %v963
    %1340 = vmatpush1.bf16.msra.mxu0 %v962
    %1341 = vmatprep.subr.bf16.mxu0 %v959
    %1342 = vmatpush1.bf16.msra.mxu0 %v958
    %1343 = vmatprep.subr.bf16.mxu0 %v955
    %1344 = vmatpush1.bf16.msra.mxu0 %v954
    %1345 = vmatprep.subr.bf16.mxu0 %v1015
    %1346 = vmatpush2.bf16.msra.mxu0 %v1014
    %1347 = vmatprep.subr.bf16.mxu0 %v1011
    %1348 = vmatpush2.bf16.msra.mxu0 %v1010
    %1349 = vmatprep.subr.bf16.mxu0 %v1007
    %1350 = vmatpush2.bf16.msra.mxu0 %v1006
    %1351 = vmatprep.subr.bf16.mxu0 %v1003
    %1352 = vmatpush2.bf16.msra.mxu0 %v1002
    %1353 = vmatprep.subr.bf16.mxu0 %v999
    %1354 = vmatpush2.bf16.msra.mxu0 %v998
    %1355 = vmatprep.subr.bf16.mxu0 %v995
    %1356 = vmatpush2.bf16.msra.mxu0 %v994
    %1357 = vmatprep.subr.bf16.mxu0 %v991
    %1358 = vmatpush2.bf16.msra.mxu0 %v990
    %1359 = vmatprep.subr.bf16.mxu0 %v987
    %1360 = vmatpush2.bf16.msra.mxu0 %v986
    %1361 = vmatprep.mubr.bf16.mxu0 %v292
    %1362 = vmatmul.mubr.bf16.gmra.mxu0 %v291
    %v1363 = vpop.f32.mrf.mxu0
    %v1364 = vadd.f32 %v1321, %v1363
    %v1365 = vpop.f32.mrf.mxu0
    %v1366 = vadd.f32 %v1323, %v1365
    %v1367 = vpop.f32.mrf.mxu0
    %v1368 = vadd.f32 %v1325, %v1367
    %v1369 = vpop.f32.mrf.mxu0
    %v1370 = vadd.f32 %v1327, %v1369
    %1371 = vdwg.mxu0
    %1372 = vmatprep.subr.bf16.mxu0 %v1047
    %1373 = vmatpush1.bf16.msra.mxu0 %v1046
    %1374 = vmatprep.subr.bf16.mxu0 %v1043
    %1375 = vmatpush1.bf16.msra.mxu0 %v1042
    %1376 = vmatprep.subr.bf16.mxu0 %v1039
    %1377 = vmatpush1.bf16.msra.mxu0 %v1038
    %1378 = vmatprep.subr.bf16.mxu0 %v1035
    %1379 = vmatpush1.bf16.msra.mxu0 %v1034
    %1380 = vmatprep.subr.bf16.mxu0 %v1031
    %1381 = vmatpush1.bf16.msra.mxu0 %v1030
    %1382 = vmatprep.subr.bf16.mxu0 %v1027
    %1383 = vmatpush1.bf16.msra.mxu0 %v1026
    %1384 = vmatprep.subr.bf16.mxu0 %v1023
    %1385 = vmatpush1.bf16.msra.mxu0 %v1022
    %1386 = vmatprep.subr.bf16.mxu0 %v1019
    %1387 = vmatpush1.bf16.msra.mxu0 %v1018
    %1388 = vmatprep.subr.bf16.mxu0 %v1079
    %1389 = vmatpush2.bf16.msra.mxu0 %v1078
    %1390 = vmatprep.subr.bf16.mxu0 %v1075
    %1391 = vmatpush2.bf16.msra.mxu0 %v1074
    %1392 = vmatprep.subr.bf16.mxu0 %v1071
    %1393 = vmatpush2.bf16.msra.mxu0 %v1070
    %1394 = vmatprep.subr.bf16.mxu0 %v1067
    %1395 = vmatpush2.bf16.msra.mxu0 %v1066
    %1396 = vmatprep.subr.bf16.mxu0 %v1063
    %1397 = vmatpush2.bf16.msra.mxu0 %v1062
    %1398 = vmatprep.subr.bf16.mxu0 %v1059
    %1399 = vmatpush2.bf16.msra.mxu0 %v1058
    %1400 = vmatprep.subr.bf16.mxu0 %v1055
    %1401 = vmatpush2.bf16.msra.mxu0 %v1054
    %1402 = vmatprep.subr.bf16.mxu0 %v1051
    %1403 = vmatpush2.bf16.msra.mxu0 %v1050
    %1404 = vmatprep.mubr.bf16.mxu0 %v294
    %1405 = vmatmul.mubr.bf16.gmra.mxu0 %v293
    %v1406 = vpop.f32.mrf.mxu0
    %v1407 = vadd.f32 %v1364, %v1406
    %v1408 = vpop.f32.mrf.mxu0
    %v1409 = vadd.f32 %v1366, %v1408
    %v1410 = vpop.f32.mrf.mxu0
    %v1411 = vadd.f32 %v1368, %v1410
    %v1412 = vpop.f32.mrf.mxu0
    %v1413 = vadd.f32 %v1370, %v1412
    %1414 = vdwg.mxu0
    %1415 = vmatprep.subr.bf16.mxu0 0
    %1416 = vmatpush1.bf16.msra.mxu0 0
    %1417 = vmatprep.subr.bf16.mxu0 0
    %1418 = vmatpush1.bf16.msra.mxu0 0
    %1419 = vmatprep.subr.bf16.mxu0 0
    %1420 = vmatpush1.bf16.msra.mxu0 0
    %1421 = vmatprep.subr.bf16.mxu0 0
    %1422 = vmatpush1.bf16.msra.mxu0 0
    %1423 = vmatprep.subr.bf16.mxu0 0
    %1424 = vmatpush1.bf16.msra.mxu0 0
    %1425 = vmatprep.subr.bf16.mxu0 0
    %1426 = vmatpush1.bf16.msra.mxu0 0
    %1427 = vmatprep.subr.bf16.mxu0 0
    %1428 = vmatpush1.bf16.msra.mxu0 0
    %1429 = vmatprep.subr.bf16.mxu0 %v1083
    %1430 = vmatpush1.bf16.msra.mxu0 %v1082
    %1431 = vmatprep.subr.bf16.mxu0 0
    %1432 = vmatpush2.bf16.msra.mxu0 0
    %1433 = vmatprep.subr.bf16.mxu0 0
    %1434 = vmatpush2.bf16.msra.mxu0 0
    %1435 = vmatprep.subr.bf16.mxu0 0
    %1436 = vmatpush2.bf16.msra.mxu0 0
    %1437 = vmatprep.subr.bf16.mxu0 0
    %1438 = vmatpush2.bf16.msra.mxu0 0
    %1439 = vmatprep.subr.bf16.mxu0 0
    %1440 = vmatpush2.bf16.msra.mxu0 0
    %1441 = vmatprep.subr.bf16.mxu0 0
    %1442 = vmatpush2.bf16.msra.mxu0 0
    %1443 = vmatprep.subr.bf16.mxu0 0
    %1444 = vmatpush2.bf16.msra.mxu0 0
    %1445 = vmatprep.subr.bf16.mxu0 0
    %1446 = vmatpush2.bf16.msra.mxu0 0
    %1447 = vmatprep.mubr.bf16.mxu0 0
    %1448 = vmatmul.mubr.bf16.gmra.mxu0 %v1284
    %v1449 = vpop.f32.mrf.mxu0
    %v1450 = vadd.f32 %v1407, %v1449
    %v1451 = vpop.f32.mrf.mxu0
    %v1452 = vadd.f32 %v1409, %v1451
    %v1453 = vpop.f32.mrf.mxu0
    %v1454 = vadd.f32 %v1411, %v1453
    %v1455 = vpop.f32.mrf.mxu0
    %v1456 = vadd.f32 %v1413, %v1455
    %1457 = vdwg.mxu0
    %1458 = vmatprep.subr.bf16.mxu0 %v921
    %1459 = vmatpush1.bf16.msra.mxu0 %v920
    %1460 = vmatprep.subr.bf16.mxu0 %v917
    %1461 = vmatpush1.bf16.msra.mxu0 %v916
    %1462 = vmatprep.subr.bf16.mxu0 %v913
    %1463 = vmatpush1.bf16.msra.mxu0 %v912
    %1464 = vmatprep.subr.bf16.mxu0 %v909
    %1465 = vmatpush1.bf16.msra.mxu0 %v908
    %1466 = vmatprep.subr.bf16.mxu0 %v905
    %1467 = vmatpush1.bf16.msra.mxu0 %v904
    %1468 = vmatprep.subr.bf16.mxu0 %v901
    %1469 = vmatpush1.bf16.msra.mxu0 %v900
    %1470 = vmatprep.subr.bf16.mxu0 %v897
    %1471 = vmatpush1.bf16.msra.mxu0 %v896
    %1472 = vmatprep.subr.bf16.mxu0 %v893
    %1473 = vmatpush1.bf16.msra.mxu0 %v892
    %1474 = vmatprep.subr.bf16.mxu0 %v953
    %1475 = vmatpush2.bf16.msra.mxu0 %v952
    %1476 = vmatprep.subr.bf16.mxu0 %v949
    %1477 = vmatpush2.bf16.msra.mxu0 %v948
    %1478 = vmatprep.subr.bf16.mxu0 %v945
    %1479 = vmatpush2.bf16.msra.mxu0 %v944
    %1480 = vmatprep.subr.bf16.mxu0 %v941
    %1481 = vmatpush2.bf16.msra.mxu0 %v940
    %1482 = vmatprep.subr.bf16.mxu0 %v937
    %1483 = vmatpush2.bf16.msra.mxu0 %v936
    %1484 = vmatprep.subr.bf16.mxu0 %v933
    %1485 = vmatpush2.bf16.msra.mxu0 %v932
    %1486 = vmatprep.subr.bf16.mxu0 %v929
    %1487 = vmatpush2.bf16.msra.mxu0 %v928
    %1488 = vmatprep.subr.bf16.mxu0 %v925
    %1489 = vmatpush2.bf16.msra.mxu0 %v924
    %1490 = vmatprep.mubr.bf16.mxu0 %v290
    %1491 = vmatmul.mubr.bf16.gmra.mxu0 %v289
    %v1492 = vpop.f32.mrf.mxu0
    %v1493 = vadd.f32 %v258, %v1492
    %v1494 = vpop.f32.mrf.mxu0
    %v1495 = vadd.f32 %v262, %v1494
    %v1496 = vpop.f32.mrf.mxu0
    %v1497 = vadd.f32 %v258, %v1496
    %v1498 = vpop.f32.mrf.mxu0
    %v1499 = vadd.f32 %v262, %v1498
    %1500 = vdwg.mxu0
    %1501 = vmatprep.subr.bf16.mxu0 %v985
    %1502 = vmatpush1.bf16.msra.mxu0 %v984
    %1503 = vmatprep.subr.bf16.mxu0 %v981
    %1504 = vmatpush1.bf16.msra.mxu0 %v980
    %1505 = vmatprep.subr.bf16.mxu0 %v977
    %1506 = vmatpush1.bf16.msra.mxu0 %v976
    %1507 = vmatprep.subr.bf16.mxu0 %v973
    %1508 = vmatpush1.bf16.msra.mxu0 %v972
    %1509 = vmatprep.subr.bf16.mxu0 %v969
    %1510 = vmatpush1.bf16.msra.mxu0 %v968
    %1511 = vmatprep.subr.bf16.mxu0 %v965
    %1512 = vmatpush1.bf16.msra.mxu0 %v964
    %1513 = vmatprep.subr.bf16.mxu0 %v961
    %1514 = vmatpush1.bf16.msra.mxu0 %v960
    %1515 = vmatprep.subr.bf16.mxu0 %v957
    %1516 = vmatpush1.bf16.msra.mxu0 %v956
    %1517 = vmatprep.subr.bf16.mxu0 %v1017
    %1518 = vmatpush2.bf16.msra.mxu0 %v1016
    %1519 = vmatprep.subr.bf16.mxu0 %v1013
    %1520 = vmatpush2.bf16.msra.mxu0 %v1012
    %1521 = vmatprep.subr.bf16.mxu0 %v1009
    %1522 = vmatpush2.bf16.msra.mxu0 %v1008
    %1523 = vmatprep.subr.bf16.mxu0 %v1005
    %1524 = vmatpush2.bf16.msra.mxu0 %v1004
    %1525 = vmatprep.subr.bf16.mxu0 %v1001
    %1526 = vmatpush2.bf16.msra.mxu0 %v1000
    %1527 = vmatprep.subr.bf16.mxu0 %v997
    %1528 = vmatpush2.bf16.msra.mxu0 %v996
    %1529 = vmatprep.subr.bf16.mxu0 %v993
    %1530 = vmatpush2.bf16.msra.mxu0 %v992
    %1531 = vmatprep.subr.bf16.mxu0 %v989
    %1532 = vmatpush2.bf16.msra.mxu0 %v988
    %1533 = vmatprep.mubr.bf16.mxu0 %v292
    %1534 = vmatmul.mubr.bf16.gmra.mxu0 %v291
    %v1535 = vpop.f32.mrf.mxu0
    %v1536 = vadd.f32 %v1493, %v1535
    %v1537 = vpop.f32.mrf.mxu0
    %v1538 = vadd.f32 %v1495, %v1537
    %v1539 = vpop.f32.mrf.mxu0
    %v1540 = vadd.f32 %v1497, %v1539
    %v1541 = vpop.f32.mrf.mxu0
    %v1542 = vadd.f32 %v1499, %v1541
    %1543 = vdwg.mxu0
    %1544 = vmatprep.subr.bf16.mxu0 %v1049
    %1545 = vmatpush1.bf16.msra.mxu0 %v1048
    %1546 = vmatprep.subr.bf16.mxu0 %v1045
    %1547 = vmatpush1.bf16.msra.mxu0 %v1044
    %1548 = vmatprep.subr.bf16.mxu0 %v1041
    %1549 = vmatpush1.bf16.msra.mxu0 %v1040
    %1550 = vmatprep.subr.bf16.mxu0 %v1037
    %1551 = vmatpush1.bf16.msra.mxu0 %v1036
    %1552 = vmatprep.subr.bf16.mxu0 %v1033
    %1553 = vmatpush1.bf16.msra.mxu0 %v1032
    %1554 = vmatprep.subr.bf16.mxu0 %v1029
    %1555 = vmatpush1.bf16.msra.mxu0 %v1028
    %1556 = vmatprep.subr.bf16.mxu0 %v1025
    %1557 = vmatpush1.bf16.msra.mxu0 %v1024
    %1558 = vmatprep.subr.bf16.mxu0 %v1021
    %1559 = vmatpush1.bf16.msra.mxu0 %v1020
    %1560 = vmatprep.subr.bf16.mxu0 %v1081
    %1561 = vmatpush2.bf16.msra.mxu0 %v1080
    %1562 = vmatprep.subr.bf16.mxu0 %v1077
    %1563 = vmatpush2.bf16.msra.mxu0 %v1076
    %1564 = vmatprep.subr.bf16.mxu0 %v1073
    %1565 = vmatpush2.bf16.msra.mxu0 %v1072
    %1566 = vmatprep.subr.bf16.mxu0 %v1069
    %1567 = vmatpush2.bf16.msra.mxu0 %v1068
    %1568 = vmatprep.subr.bf16.mxu0 %v1065
    %1569 = vmatpush2.bf16.msra.mxu0 %v1064
    %1570 = vmatprep.subr.bf16.mxu0 %v1061
    %1571 = vmatpush2.bf16.msra.mxu0 %v1060
    %1572 = vmatprep.subr.bf16.mxu0 %v1057
    %1573 = vmatpush2.bf16.msra.mxu0 %v1056
    %1574 = vmatprep.subr.bf16.mxu0 %v1053
    %1575 = vmatpush2.bf16.msra.mxu0 %v1052
    %1576 = vmatprep.mubr.bf16.mxu0 %v294
    %1577 = vmatmul.mubr.bf16.gmra.mxu0 %v293
    %v1578 = vpop.f32.mrf.mxu0
    %v1579 = vadd.f32 %v1536, %v1578
    %v1580 = vpop.f32.mrf.mxu0
    %v1581 = vadd.f32 %v1538, %v1580
    %v1582 = vpop.f32.mrf.mxu0
    %v1583 = vadd.f32 %v1540, %v1582
    %v1584 = vpop.f32.mrf.mxu0
    %v1585 = vadd.f32 %v1542, %v1584
    %1586 = vdwg.mxu0
    %1587 = vmatprep.subr.bf16.mxu0 0
    %1588 = vmatpush1.bf16.msra.mxu0 0
    %1589 = vmatprep.subr.bf16.mxu0 0
    %1590 = vmatpush1.bf16.msra.mxu0 0
    %1591 = vmatprep.subr.bf16.mxu0 0
    %1592 = vmatpush1.bf16.msra.mxu0 0
    %1593 = vmatprep.subr.bf16.mxu0 0
    %1594 = vmatpush1.bf16.msra.mxu0 0
    %1595 = vmatprep.subr.bf16.mxu0 0
    %1596 = vmatpush1.bf16.msra.mxu0 0
    %1597 = vmatprep.subr.bf16.mxu0 0
    %1598 = vmatpush1.bf16.msra.mxu0 0
    %1599 = vmatprep.subr.bf16.mxu0 0
    %1600 = vmatpush1.bf16.msra.mxu0 0
    %1601 = vmatprep.subr.bf16.mxu0 %v1085
    %1602 = vmatpush1.bf16.msra.mxu0 %v1084
    %1603 = vmatprep.subr.bf16.mxu0 0
    %1604 = vmatpush2.bf16.msra.mxu0 0
    %1605 = vmatprep.subr.bf16.mxu0 0
    %1606 = vmatpush2.bf16.msra.mxu0 0
    %1607 = vmatprep.subr.bf16.mxu0 0
    %1608 = vmatpush2.bf16.msra.mxu0 0
    %1609 = vmatprep.subr.bf16.mxu0 0
    %1610 = vmatpush2.bf16.msra.mxu0 0
    %1611 = vmatprep.subr.bf16.mxu0 0
    %1612 = vmatpush2.bf16.msra.mxu0 0
    %1613 = vmatprep.subr.bf16.mxu0 0
    %1614 = vmatpush2.bf16.msra.mxu0 0
    %1615 = vmatprep.subr.bf16.mxu0 0
    %1616 = vmatpush2.bf16.msra.mxu0 0
    %1617 = vmatprep.subr.bf16.mxu0 0
    %1618 = vmatpush2.bf16.msra.mxu0 0
    %1619 = vmatprep.mubr.bf16.mxu0 0
    %1620 = vmatmul.mubr.bf16.gmra.mxu0 %v1284
    %v1621 = vpop.f32.mrf.mxu0
    %v1622 = vadd.f32 %v1579, %v1621
    %v1623 = vpop.f32.mrf.mxu0
    %v1624 = vadd.f32 %v1581, %v1623
    %v1625 = vpop.f32.mrf.mxu0
    %v1626 = vadd.f32 %v1583, %v1625
    %v1627 = vpop.f32.mrf.mxu0
    %v1628 = vadd.f32 %v1585, %v1627
    %1629 = vdwg.mxu0
    %v1630 = vmax.f32 %v1450, 0.0
    %v1631 = vmax.f32 %v1452, 0.0
    %v1632 = vmax.f32 %v1622, 0.0
    %v1633 = vmax.f32 %v1624, 0.0
    %v1634 = vmax.f32 %v1454, 0.0
    %v1635 = vmax.f32 %v1456, 0.0
    %v1636 = vmax.f32 %v1626, 0.0
    %v1637 = vmax.f32 %v1628, 0.0
    %v1638 = vpack.c.bf16 %v1634, %v1630
    %v1639 = vpack.c.bf16 %v1635, %v1631
    %v1640 = vpack.c.bf16 %v1636, %v1632
    %v1641 = vpack.c.bf16 %v1637, %v1633
    %v1642 = vld [vmem:[%s3] sm:$0xf]
    %v1643 = vld [vmem:[%s3 + $0x4] sm:$0xf]
    %v1644 = vld [vmem:[%s3 + $0x8] sm:$0xf]
    %v1645 = vld [vmem:[%s3 + $0xc] sm:$0xf]
    %v1646 = vld [vmem:[%s3 + $0x10] sm:$0xf]
    %v1647 = vld [vmem:[%s3 + $0x14] sm:$0xf]
    %v1648 = vld [vmem:[%s3 + $0x18] sm:$0xf]
    %v1649 = vld [vmem:[%s3 + $0x1c] sm:$0xf]
    %v1650 = vld [vmem:[%s3 + $0x20] sm:$0xf]
    %v1651 = vld [vmem:[%s3 + $0x24] sm:$0xf]
    %v1652 = vld [vmem:[%s3 + $0x28] sm:$0xf]
    %v1653 = vld [vmem:[%s3 + $0x2c] sm:$0xf]
    %v1654 = vld [vmem:[%s3 + $0x30] sm:$0xf]
    %v1655 = vld [vmem:[%s3 + $0x34] sm:$0xf]
    %v1656 = vld [vmem:[%s3 + $0x38] sm:$0xf]
    %v1657 = vld [vmem:[%s3 + $0x3c] sm:$0xf]
    %v1658 = vld [vmem:[%s3 + $0x40] sm:$0xf]
    %v1659 = vld [vmem:[%s3 + $0x44] sm:$0xf]
    %v1660 = vld [vmem:[%s3 + $0x48] sm:$0xf]
    %v1661 = vld [vmem:[%s3 + $0x4c] sm:$0xf]
    %v1662 = vld [vmem:[%s3 + $0x50] sm:$0xf]
    %v1663 = vld [vmem:[%s3 + $0x54] sm:$0xf]
    %v1664 = vld [vmem:[%s3 + $0x58] sm:$0xf]
    %v1665 = vld [vmem:[%s3 + $0x5c] sm:$0xf]
    %v1666 = vld [vmem:[%s3 + $0x60] sm:$0xf]
    %v1667 = vld [vmem:[%s3 + $0x64] sm:$0xf]
    %v1668 = vld [vmem:[%s3 + $0x68] sm:$0xf]
    %v1669 = vld [vmem:[%s3 + $0x6c] sm:$0xf]
    %v1670 = vld [vmem:[%s3 + $0x70] sm:$0xf]
    %v1671 = vld [vmem:[%s3 + $0x74] sm:$0xf]
    %v1672 = vld [vmem:[%s3 + $0x78] sm:$0xf]
    %v1673 = vld [vmem:[%s3 + $0x7c] sm:$0xf]
    %v1674 = vld [vmem:[%s3 + $0x80] sm:$0xf]
    %v1675 = vld [vmem:[%s3 + $0x84] sm:$0xf]
    %v1676 = vld [vmem:[%s3 + $0x88] sm:$0xf]
    %v1677 = vld [vmem:[%s3 + $0x8c] sm:$0xf]
    %v1678 = vld [vmem:[%s3 + $0x90] sm:$0xf]
    %v1679 = vld [vmem:[%s3 + $0x94] sm:$0xf]
    %v1680 = vld [vmem:[%s3 + $0x98] sm:$0xf]
    %v1681 = vld [vmem:[%s3 + $0x9c] sm:$0xf]
    %v1682 = vld [vmem:[%s3 + $0xa0] sm:$0xf]
    %v1683 = vld [vmem:[%s3 + $0xa4] sm:$0xf]
    %v1684 = vld [vmem:[%s3 + $0xa8] sm:$0xf]
    %v1685 = vld [vmem:[%s3 + $0xac] sm:$0xf]
    %v1686 = vld [vmem:[%s3 + $0xb0] sm:$0xf]
    %v1687 = vld [vmem:[%s3 + $0xb4] sm:$0xf]
    %v1688 = vld [vmem:[%s3 + $0xb8] sm:$0xf]
    %v1689 = vld [vmem:[%s3 + $0xbc] sm:$0xf]
    %v1690 = vld [vmem:[%s3 + $0xc0] sm:$0xf]
    %v1691 = vld [vmem:[%s3 + $0xc4] sm:$0xf]
    %v1692 = vld [vmem:[%s3 + $0xc8] sm:$0xf]
    %v1693 = vld [vmem:[%s3 + $0xcc] sm:$0xf]
    %v1694 = vld [vmem:[%s3 + $0xd0] sm:$0xf]
    %v1695 = vld [vmem:[%s3 + $0xd4] sm:$0xf]
    %v1696 = vld [vmem:[%s3 + $0xd8] sm:$0xf]
    %v1697 = vld [vmem:[%s3 + $0xdc] sm:$0xf]
    %v1698 = vld [vmem:[%s3 + $0xe0] sm:$0xf]
    %v1699 = vld [vmem:[%s3 + $0xe4] sm:$0xf]
    %v1700 = vld [vmem:[%s3 + $0xe8] sm:$0xf]
    %v1701 = vld [vmem:[%s3 + $0xec] sm:$0xf]
    %v1702 = vld [vmem:[%s3 + $0xf0] sm:$0xf]
    %v1703 = vld [vmem:[%s3 + $0xf4] sm:$0xf]
    %v1704 = vld [vmem:[%s3 + $0xf8] sm:$0xf]
    %v1705 = vld [vmem:[%s3 + $0xfc] sm:$0xf]
    %v1706 = vld [vmem:[%s4] sm:$0x1]
    %v1708 = vlaneseq
    %v1709 = vshrl.u32 %v1708, 7
    %v1710 = vsub.s32 0, %v1709
    %v1711 = vrot.slane %v1706, %v1710
    %v1777 = vunpack.c.l.b16 %v1642
    %v1778 = vunpack.c.l.b16 %v1643
    %v1779 = vunpack.c.l.b16 %v1644
    %v1780 = vunpack.c.l.b16 %v1645
    %v1781 = vunpack.c.l.b16 %v1646
    %v1782 = vunpack.c.l.b16 %v1647
    %v1783 = vunpack.c.l.b16 %v1648
    %v1784 = vunpack.c.l.b16 %v1649
    %v1785 = vunpack.c.l.b16 %v1650
    %v1786 = vunpack.c.l.b16 %v1651
    %v1787 = vunpack.c.l.b16 %v1652
    %v1788 = vunpack.c.l.b16 %v1653
    %v1789 = vunpack.c.l.b16 %v1654
    %v1790 = vunpack.c.l.b16 %v1655
    %v1791 = vunpack.c.l.b16 %v1656
    %v1792 = vunpack.c.l.b16 %v1657
    %v1793 = vunpack.c.l.b16 %v1658
    %v1794 = vunpack.c.l.b16 %v1659
    %v1795 = vunpack.c.l.b16 %v1660
    %v1796 = vunpack.c.l.b16 %v1661
    %v1797 = vunpack.c.l.b16 %v1662
    %v1798 = vunpack.c.l.b16 %v1663
    %v1799 = vunpack.c.l.b16 %v1664
    %v1800 = vunpack.c.l.b16 %v1665
    %v1801 = vunpack.c.l.b16 %v1666
    %v1802 = vunpack.c.l.b16 %v1667
    %v1803 = vunpack.c.l.b16 %v1668
    %v1804 = vunpack.c.l.b16 %v1669
    %v1805 = vunpack.c.l.b16 %v1670
    %v1806 = vunpack.c.l.b16 %v1671
    %v1807 = vunpack.c.l.b16 %v1672
    %v1808 = vunpack.c.l.b16 %v1673
    %v1809 = vunpack.c.l.b16 %v1674
    %v1810 = vunpack.c.l.b16 %v1675
    %v1811 = vunpack.c.l.b16 %v1676
    %v1812 = vunpack.c.l.b16 %v1677
    %v1813 = vunpack.c.l.b16 %v1678
    %v1814 = vunpack.c.l.b16 %v1679
    %v1815 = vunpack.c.l.b16 %v1680
    %v1816 = vunpack.c.l.b16 %v1681
    %v1817 = vunpack.c.l.b16 %v1682
    %v1818 = vunpack.c.l.b16 %v1683
    %v1819 = vunpack.c.l.b16 %v1684
    %v1820 = vunpack.c.l.b16 %v1685
    %v1821 = vunpack.c.l.b16 %v1686
    %v1822 = vunpack.c.l.b16 %v1687
    %v1823 = vunpack.c.l.b16 %v1688
    %v1824 = vunpack.c.l.b16 %v1689
    %v1825 = vunpack.c.l.b16 %v1690
    %v1826 = vunpack.c.l.b16 %v1691
    %v1827 = vunpack.c.l.b16 %v1692
    %v1828 = vunpack.c.l.b16 %v1693
    %v1829 = vunpack.c.l.b16 %v1694
    %v1830 = vunpack.c.l.b16 %v1695
    %v1831 = vunpack.c.l.b16 %v1696
    %v1832 = vunpack.c.l.b16 %v1697
    %v1833 = vunpack.c.l.b16 %v1698
    %v1834 = vunpack.c.l.b16 %v1699
    %v1835 = vunpack.c.l.b16 %v1700
    %v1836 = vunpack.c.l.b16 %v1701
    %v1837 = vunpack.c.l.b16 %v1702
    %v1838 = vunpack.c.l.b16 %v1703
    %v1839 = vunpack.c.l.b16 %v1704
    %v1840 = vunpack.c.l.b16 %v1705
    %v1841 = vpack.c.b16 %v1778, %v1777
    %v1842 = vpack.c.b16 %v1780, %v1779
    %v1843 = vpack.c.b16 %v1782, %v1781
    %v1844 = vpack.c.b16 %v1784, %v1783
    %v1845 = vpack.c.b16 %v1786, %v1785
    %v1846 = vpack.c.b16 %v1788, %v1787
    %v1847 = vpack.c.b16 %v1790, %v1789
    %v1848 = vpack.c.b16 %v1792, %v1791
    %v1849 = vpack.c.b16 %v1794, %v1793
    %v1850 = vpack.c.b16 %v1796, %v1795
    %v1851 = vpack.c.b16 %v1798, %v1797
    %v1852 = vpack.c.b16 %v1800, %v1799
    %v1853 = vpack.c.b16 %v1802, %v1801
    %v1854 = vpack.c.b16 %v1804, %v1803
    %v1855 = vpack.c.b16 %v1806, %v1805
    %v1856 = vpack.c.b16 %v1808, %v1807
    %v1857 = vpack.c.b16 %v1810, %v1809
    %v1858 = vpack.c.b16 %v1812, %v1811
    %v1859 = vpack.c.b16 %v1814, %v1813
    %v1860 = vpack.c.b16 %v1816, %v1815
    %v1861 = vpack.c.b16 %v1818, %v1817
    %v1862 = vpack.c.b16 %v1820, %v1819
    %v1863 = vpack.c.b16 %v1822, %v1821
    %v1864 = vpack.c.b16 %v1824, %v1823
    %v1865 = vpack.c.b16 %v1826, %v1825
    %v1866 = vpack.c.b16 %v1828, %v1827
    %v1867 = vpack.c.b16 %v1830, %v1829
    %v1868 = vpack.c.b16 %v1832, %v1831
    %v1869 = vpack.c.b16 %v1834, %v1833
    %v1870 = vpack.c.b16 %v1836, %v1835
    %v1871 = vpack.c.b16 %v1838, %v1837
    %v1872 = vpack.c.b16 %v1840, %v1839
    %1905 = vmatprep.subr.bf16.mxu0 0
    %1906 = vmatpush1.bf16.msra.mxu0 %v1848
    %1907 = vmatprep.subr.bf16.mxu0 0
    %1908 = vmatpush1.bf16.msra.mxu0 %v1847
    %1909 = vmatprep.subr.bf16.mxu0 0
    %1910 = vmatpush1.bf16.msra.mxu0 %v1846
    %1911 = vmatprep.subr.bf16.mxu0 0
    %1912 = vmatpush1.bf16.msra.mxu0 %v1845
    %1913 = vmatprep.subr.bf16.mxu0 0
    %1914 = vmatpush1.bf16.msra.mxu0 %v1844
    %1915 = vmatprep.subr.bf16.mxu0 0
    %1916 = vmatpush1.bf16.msra.mxu0 %v1843
    %1917 = vmatprep.subr.bf16.mxu0 0
    %1918 = vmatpush1.bf16.msra.mxu0 %v1842
    %1919 = vmatprep.subr.bf16.mxu0 0
    %1920 = vmatpush1.bf16.msra.mxu0 %v1841
    %1921 = vmatprep.subr.bf16.mxu0 0
    %1922 = vmatpush2.bf16.msra.mxu0 %v1856
    %1923 = vmatprep.subr.bf16.mxu0 0
    %1924 = vmatpush2.bf16.msra.mxu0 %v1855
    %1925 = vmatprep.subr.bf16.mxu0 0
    %1926 = vmatpush2.bf16.msra.mxu0 %v1854
    %1927 = vmatprep.subr.bf16.mxu0 0
    %1928 = vmatpush2.bf16.msra.mxu0 %v1853
    %1929 = vmatprep.subr.bf16.mxu0 0
    %1930 = vmatpush2.bf16.msra.mxu0 %v1852
    %1931 = vmatprep.subr.bf16.mxu0 0
    %1932 = vmatpush2.bf16.msra.mxu0 %v1851
    %1933 = vmatprep.subr.bf16.mxu0 0
    %1934 = vmatpush2.bf16.msra.mxu0 %v1850
    %1935 = vmatprep.subr.bf16.mxu0 0
    %1936 = vmatpush2.bf16.msra.mxu0 %v1849
    %1937 = vmatprep.mubr.bf16.mxu0 %v1639
    %1938 = vmatmul.mubr.bf16.gmra.mxu0 %v1638
    %v1939 = vpop.f32.mrf.mxu0
    %v1940 = vadd.f32 %v1711, %v1939
    %v1941 = vpop.f32.mrf.mxu0
    %v1942 = vpop.f32.mrf.mxu0
    %v1943 = vadd.f32 %v1711, %v1942
    %v1944 = vpop.f32.mrf.mxu0
    %1945 = vdwg.mxu0
    %1946 = vmatprep.subr.bf16.mxu0 0
    %1947 = vmatpush1.bf16.msra.mxu0 %v1864
    %1948 = vmatprep.subr.bf16.mxu0 0
    %1949 = vmatpush1.bf16.msra.mxu0 %v1863
    %1950 = vmatprep.subr.bf16.mxu0 0
    %1951 = vmatpush1.bf16.msra.mxu0 %v1862
    %1952 = vmatprep.subr.bf16.mxu0 0
    %1953 = vmatpush1.bf16.msra.mxu0 %v1861
    %1954 = vmatprep.subr.bf16.mxu0 0
    %1955 = vmatpush1.bf16.msra.mxu0 %v1860
    %1956 = vmatprep.subr.bf16.mxu0 0
    %1957 = vmatpush1.bf16.msra.mxu0 %v1859
    %1958 = vmatprep.subr.bf16.mxu0 0
    %1959 = vmatpush1.bf16.msra.mxu0 %v1858
    %1960 = vmatprep.subr.bf16.mxu0 0
    %1961 = vmatpush1.bf16.msra.mxu0 %v1857
    %1962 = vmatprep.subr.bf16.mxu0 0
    %1963 = vmatpush2.bf16.msra.mxu0 %v1872
    %1964 = vmatprep.subr.bf16.mxu0 0
    %1965 = vmatpush2.bf16.msra.mxu0 %v1871
    %1966 = vmatprep.subr.bf16.mxu0 0
    %1967 = vmatpush2.bf16.msra.mxu0 %v1870
    %1968 = vmatprep.subr.bf16.mxu0 0
    %1969 = vmatpush2.bf16.msra.mxu0 %v1869
    %1970 = vmatprep.subr.bf16.mxu0 0
    %1971 = vmatpush2.bf16.msra.mxu0 %v1868
    %1972 = vmatprep.subr.bf16.mxu0 0
    %1973 = vmatpush2.bf16.msra.mxu0 %v1867
    %1974 = vmatprep.subr.bf16.mxu0 0
    %1975 = vmatpush2.bf16.msra.mxu0 %v1866
    %1976 = vmatprep.subr.bf16.mxu0 0
    %1977 = vmatpush2.bf16.msra.mxu0 %v1865
    %1978 = vmatprep.mubr.bf16.mxu0 %v1641
    %1979 = vmatmul.mubr.bf16.gmra.mxu0 %v1640
    %v1980 = vpop.f32.mrf.mxu0
    %v1981 = vadd.f32 %v1940, %v1980
    %v1982 = vpop.f32.mrf.mxu0
    %v1983 = vpop.f32.mrf.mxu0
    %v1984 = vadd.f32 %v1943, %v1983
    %v1985 = vpop.f32.mrf.mxu0
    %1986 = vdwg.mxu0
    %v1987 = vmax.f32 %v1981, 0.0
    %v1988 = vmax.f32 %v1984, 0.0
    %v1989 = vpack.c.bf16 %v1988, %v1987
    %v1990 = vld [vmem:[%s5] sm:$0xf]
    %v1991 = vld [vmem:[%s5 + $0x4] sm:$0xf]
    %v1992 = vld [vmem:[%s5 + $0x8] sm:$0xf]
    %v1993 = vld [vmem:[%s5 + $0xc] sm:$0xf]
    %v1994 = vld [vmem:[%s5 + $0x10] sm:$0xf]
    %v1995 = vld [vmem:[%s5 + $0x14] sm:$0xf]
    %v1996 = vld [vmem:[%s5 + $0x18] sm:$0xf]
    %v1997 = vld [vmem:[%s5 + $0x1c] sm:$0xf]
    %v1998 = vld [vmem:[%s5 + $0x20] sm:$0xf]
    %v1999 = vld [vmem:[%s5 + $0x24] sm:$0xf]
    %v2000 = vld [vmem:[%s5 + $0x28] sm:$0xf]
    %v2001 = vld [vmem:[%s5 + $0x2c] sm:$0xf]
    %v2002 = vld [vmem:[%s5 + $0x30] sm:$0xf]
    %v2003 = vld [vmem:[%s5 + $0x34] sm:$0xf]
    %v2004 = vld [vmem:[%s5 + $0x38] sm:$0xf]
    %v2005 = vld [vmem:[%s5 + $0x3c] sm:$0xf]
    %v2006 = vld [vmem:[%s6] sm:$0x1]
    %v2008 = vlaneseq
    %v2009 = vshrl.u32 %v2008, 7
    %v2010 = vsub.s32 0, %v2009
    %v2011 = vrot.slane %v2006, %v2010
    %v2029 = vunpack.c.l.b16 %v1990
    %v2030 = vunpack.c.l.b16 %v1991
    %v2031 = vunpack.c.l.b16 %v1992
    %v2032 = vunpack.c.l.b16 %v1993
    %v2033 = vunpack.c.l.b16 %v1994
    %v2034 = vunpack.c.l.b16 %v1995
    %v2035 = vunpack.c.l.b16 %v1996
    %v2036 = vunpack.c.l.b16 %v1997
    %v2037 = vunpack.c.l.b16 %v1998
    %v2038 = vunpack.c.l.b16 %v1999
    %v2039 = vunpack.c.l.b16 %v2000
    %v2040 = vunpack.c.l.b16 %v2001
    %v2041 = vunpack.c.l.b16 %v2002
    %v2042 = vunpack.c.l.b16 %v2003
    %v2043 = vunpack.c.l.b16 %v2004
    %v2044 = vunpack.c.l.b16 %v2005
    %v2045 = vpack.c.b16 %v2030, %v2029
    %v2046 = vpack.c.b16 %v2032, %v2031
    %v2047 = vpack.c.b16 %v2034, %v2033
    %v2048 = vpack.c.b16 %v2036, %v2035
    %v2049 = vpack.c.b16 %v2038, %v2037
    %v2050 = vpack.c.b16 %v2040, %v2039
    %v2051 = vpack.c.b16 %v2042, %v2041
    %v2052 = vpack.c.b16 %v2044, %v2043
    %2061 = vmatprep.subr.bf16.mxu0 0
    %2062 = vmatpush1.bf16.msra.mxu0 %v2052
    %2063 = vmatprep.subr.bf16.mxu0 0
    %2064 = vmatpush1.bf16.msra.mxu0 %v2051
    %2065 = vmatprep.subr.bf16.mxu0 0
    %2066 = vmatpush1.bf16.msra.mxu0 %v2050
    %2067 = vmatprep.subr.bf16.mxu0 0
    %2068 = vmatpush1.bf16.msra.mxu0 %v2049
    %2069 = vmatprep.subr.bf16.mxu0 0
    %2070 = vmatpush1.bf16.msra.mxu0 %v2048
    %2071 = vmatprep.subr.bf16.mxu0 0
    %2072 = vmatpush1.bf16.msra.mxu0 %v2047
    %2073 = vmatprep.subr.bf16.mxu0 0
    %2074 = vmatpush1.bf16.msra.mxu0 %v2046
    %2075 = vmatprep.subr.bf16.mxu0 0
    %2076 = vmatpush1.bf16.msra.mxu0 %v2045
    %2077 = vmatprep.subr.bf16.mxu0 0
    %2078 = vmatpush2.bf16.msra.mxu0 0
    %2079 = vmatprep.subr.bf16.mxu0 0
    %2080 = vmatpush2.bf16.msra.mxu0 0
    %2081 = vmatprep.subr.bf16.mxu0 0
    %2082 = vmatpush2.bf16.msra.mxu0 0
    %2083 = vmatprep.subr.bf16.mxu0 0
    %2084 = vmatpush2.bf16.msra.mxu0 0
    %2085 = vmatprep.subr.bf16.mxu0 0
    %2086 = vmatpush2.bf16.msra.mxu0 0
    %2087 = vmatprep.subr.bf16.mxu0 0
    %2088 = vmatpush2.bf16.msra.mxu0 0
    %2089 = vmatprep.subr.bf16.mxu0 0
    %2090 = vmatpush2.bf16.msra.mxu0 0
    %2091 = vmatprep.subr.bf16.mxu0 0
    %2092 = vmatpush2.bf16.msra.mxu0 0
    %2093 = vmatprep.mubr.bf16.mxu0 0
    %2094 = vmatmul.mubr.bf16.gmra.mxu0 %v1989
    %v2095 = vpop.f32.mrf.mxu0
    %v2096 = vadd.f32 %v2011, %v2095
    %v2097 = vpop.f32.mrf.mxu0
    %v2098 = vpop.f32.mrf.mxu0
    %v2099 = vadd.f32 %v2011, %v2098
    %v2100 = vpop.f32.mrf.mxu0
    %2101 = vdwg.mxu0
    %2102 = vst [vmem:[%s7] sm:$0xff] %v2096
    %2103 = vst [vmem:[%s7 + $0x8] sm:$0xff] %v2099
    // Predicated region
    $region34: #{dnn_forward.1} parent=1 // pred_check
      _
    $region35: #{dnn_forward.1} parent=1 // pred_check_branch
      %2105 = sbr.rel (0) target = $region37
    $region36: #{dnn_forward.1} parent=1 // pred_region
      _
    $region37: #{dnn_forward.1} parent=1 // pred_fallthru
      _
    // Predicated region
    $region38: #{dnn_forward.1} parent=1 // pred_check
      _
    $region39: #{dnn_forward.1} parent=1 // pred_check_branch
      %2107 = sbr.rel (0) target = $region41
    $region40: #{dnn_forward.1} parent=1 // pred_region
      _
    $region41: #{dnn_forward.1} parent=1 // pred_fallthru
      _
    %2108 = vsyncpa [#allocation3], 1

</llo_original>
